<compile_context>
chip_gen: v5e
topology: v5e:2x2
jax: 0.10.0
libtpu: 0.0.40
codegen_flags: <defaults>
</compile_context>

<pallas_src>
import numpy as np
import jax
import jax.numpy as jnp
from jax.experimental import pallas as pl
from jax.experimental.pallas import tpu as pltpu

# ---------------- hyperparameters (mirror the PyTorch __init__) --------------
INPUT_SIZE = 1
RESERVOIR_SIZE = 40
OUTPUT_SIZE = 4
LSTM_HIDDEN = 32
SPECTRAL_RADIUS = 0.9
LEAK_RATE = 0.1
SPARSITY = 0.3

CORE = int(RESERVOIR_SIZE * 0.6)                      # 24
SHELL = int(RESERVOIR_SIZE * 0.3)                     # 12
FBACK = RESERVOIR_SIZE - (CORE + SHELL)               # 4

VMEM_SPEC = pl.BlockSpec(memory_space=pltpu.MemorySpace.VMEM)
SMEM_SPEC = pl.BlockSpec(memory_space=pltpu.MemorySpace.SMEM)

_HI = jax.lax.Precision.HIGHEST


def _dot(a, b):
    return jnp.dot(a, b, preferred_element_type=jnp.float32, precision=_HI)


# ------------------------------ fused kernel ---------------------------------
def bio_esn_kernel(x_ref, state_ref, h_ref, c_ref,
                   w_in_pad_ref, w_res_t_ref, w_sc_pad_t_ref, w_fc_pad_t_ref,
                   ho_a_ref, ho_b_ref,
                   w_ih_t_ref, w_hh_t_ref, lstm_b_ref,
                   w_out_t_ref, b_out_ref,
                   out_ref, new_state_ref, new_h_ref, new_c_ref):
    # x: SMEM scalar (INPUT_SIZE == 1). state: (1,R). h, c: (1,H).
    x = x_ref[0, 0]
    state = state_ref[...]
    h = h_ref[...]
    c = c_ref[...]

    # --- reservoir stage 1: fused block-diagonal recurrent matmul -----------
    #   pred = [ tanh(core@Wc^T + x*W_in_core) | tanh(shell@Ws^T) | tanh(fb@Wf^T) ]
    pred = jnp.tanh(_dot(state, w_res_t_ref[...]) + x * w_in_pad_ref[...])

    # --- reservoir stage 2: shell->core and feedback->core cross terms ------
    # Weights are zero except rows [CORE:CORE+SHELL] / [CORE+SHELL:] mapped to
    # cols [:CORE]; tanh(0)=0 on the non-core lanes, so shell/fb stay intact.
    pred = (pred
            + jnp.tanh(_dot(pred, w_sc_pad_t_ref[...]))
            + jnp.tanh(_dot(pred, w_fc_pad_t_ref[...])))

    # --- leak + harmonic oscillator + dopamine (folded host-side) -----------
    s_new = (1.0 - LEAK_RATE) * state + LEAK_RATE * pred
    combined = ho_a_ref[...] * s_new - ho_b_ref[...] * jnp.tanh(s_new)

    # --- LSTM cell: two matmuls into a lane-dense (1, 4H) gate buffer -------
    gates = (_dot(combined, w_ih_t_ref[...])
             + _dot(h, w_hh_t_ref[...])
             + lstm_b_ref[...])                       # (1, 128), order i,f,g,o
    i = jax.nn.sigmoid(gates[:, 0 * LSTM_HIDDEN:1 * LSTM_HIDDEN])
    f = jax.nn.sigmoid(gates[:, 1 * LSTM_HIDDEN:2 * LSTM_HIDDEN])
    g = jnp.tanh(gates[:, 2 * LSTM_HIDDEN:3 * LSTM_HIDDEN])
    o = jax.nn.sigmoid(gates[:, 3 * LSTM_HIDDEN:4 * LSTM_HIDDEN])

    c_new = f * c + i * g
    h_new = o * jnp.tanh(c_new)

    # --- linear readout ------------------------------------------------------
    out_ref[...] = _dot(h_new, w_out_t_ref[...]) + b_out_ref[...]
    new_state_ref[...] = combined
    new_h_ref[...] = h_new
    new_c_ref[...] = c_new


# ------------------------------ wrapper ---------------------------------------
def bio_esn_forward(params, x, state, lstm_hidden, lstm_cell):
    """Mirrors BioInspiredESN.forward.

    x: (INPUT_SIZE,)  state: (1, RESERVOIR_SIZE)
    lstm_hidden, lstm_cell: (1, 1, LSTM_HIDDEN)
    """
    h = lstm_hidden.reshape(1, LSTM_HIDDEN)
    c = lstm_cell.reshape(1, LSTM_HIDDEN)
    x_s = x.reshape(1, 1).astype(jnp.float32)

    out_shapes = (
        jax.ShapeDtypeStruct((1, OUTPUT_SIZE), jnp.float32),
        jax.ShapeDtypeStruct((1, RESERVOIR_SIZE), jnp.float32),
        jax.ShapeDtypeStruct((1, LSTM_HIDDEN), jnp.float32),
        jax.ShapeDtypeStruct((1, LSTM_HIDDEN), jnp.float32),
    )
    output, combined, new_h, new_c = pl.pallas_call(
        bio_esn_kernel,
        out_shape=out_shapes,
        in_specs=[SMEM_SPEC] + [VMEM_SPEC] * 14,
        out_specs=(VMEM_SPEC,) * 4,
    )(
        x_s, state, h, c,
        params["w_in_pad"], params["W_res_blkdiag_T"],
        params["W_sc_pad_T"], params["W_fc_pad_T"],
        params["ho_a"], params["ho_b"],
        params["lstm_W_ih_T"], params["lstm_W_hh_T"], params["lstm_b"],
        params["W_out_T"], params["b_out"],
    )
    return (output, combined,
            new_h.reshape(1, 1, LSTM_HIDDEN), new_c.reshape(1, 1, LSTM_HIDDEN))


# ----------------------- deterministic parameter init ------------------------
def scale_to_spectral_radius(W, desired=SPECTRAL_RADIUS):
    s = np.linalg.svd(np.asarray(W, dtype=np.float64), compute_uv=False)
    return (W * (desired / s[0])).astype(np.float32)


def init_params(seed=0):
    rng = np.random.default_rng(seed)
    u = lambda *shape: (rng.random(shape, dtype=np.float32) * 2.0 - 1.0)

    W_in = u(RESERVOIR_SIZE, INPUT_SIZE)
    W_core = scale_to_spectral_radius(u(CORE, CORE))
    W_shell = u(SHELL, SHELL)
    mask_shell = (rng.random((SHELL, SHELL)) < SPARSITY).astype(np.float32)
    W_shell = scale_to_spectral_radius(W_shell * mask_shell)
    W_feedback = scale_to_spectral_radius(u(FBACK, FBACK))
    W_shell_core = u(CORE, SHELL)
    W_feedback_core = u(CORE, FBACK)

    omega = np.full((RESERVOIR_SIZE,), 2.0, np.float32)
    gamma = np.full((RESERVOIR_SIZE,), 0.1, np.float32)
    dopamine = np.float32(0.5)

    k = 1.0 / np.sqrt(LSTM_HIDDEN)
    W_ih = rng.uniform(-k, k, (4 * LSTM_HIDDEN, RESERVOIR_SIZE)).astype(np.float32)
    W_hh = rng.uniform(-k, k, (4 * LSTM_HIDDEN, LSTM_HIDDEN)).astype(np.float32)
    b_ih = rng.uniform(-k, k, (4 * LSTM_HIDDEN,)).astype(np.float32)
    b_hh = rng.uniform(-k, k, (4 * LSTM_HIDDEN,)).astype(np.float32)

    ko = 1.0 / np.sqrt(LSTM_HIDDEN)
    W_out = rng.uniform(-ko, ko, (OUTPUT_SIZE, LSTM_HIDDEN)).astype(np.float32)
    b_out = rng.uniform(-ko, ko, (OUTPUT_SIZE,)).astype(np.float32)

    # ---- kernel-side fused / folded parameters ------------------------------
    # block-diagonal recurrent weight, pre-transposed: state @ W_res_blkdiag_T
    W_res_T = np.zeros((RESERVOIR_SIZE, RESERVOIR_SIZE), np.float32)
    W_res_T[:CORE, :CORE] = W_core.T
    W_res_T[CORE:CORE + SHELL, CORE:CORE + SHELL] = W_shell.T
    W_res_T[CORE + SHELL:, CORE + SHELL:] = W_feedback.T

    # zero-padded shell->core / feedback->core cross weights (pre-transposed)
    W_sc_pad_T = np.zeros((RESERVOIR_SIZE, RESERVOIR_SIZE), np.float32)
    W_sc_pad_T[CORE:CORE + SHELL, :CORE] = W_shell_core.T
    W_fc_pad_T = np.zeros((RESERVOIR_SIZE, RESERVOIR_SIZE), np.float32)
    W_fc_pad_T[CORE + SHELL:, :CORE] = W_feedback_core.T

    # input drive, padded to the full reservoir width (core segment only)
    w_in_pad = np.zeros((1, RESERVOIR_SIZE), np.float32)
    w_in_pad[0, :CORE] = W_in[:CORE, 0]

    # harmonic oscillator + dopamine fold: combined = a*s - b*tanh(s)
    ho_a = (dopamine * (1.0 + 0.1 * omega)).reshape(1, RESERVOIR_SIZE).astype(np.float32)
    ho_b = (dopamine * 0.1 * gamma).reshape(1, RESERVOIR_SIZE).astype(np.float32)

    p = {
        "w_in_pad": jnp.asarray(w_in_pad),
        "W_res_blkdiag_T": jnp.asarray(W_res_T),
        "W_sc_pad_T": jnp.asarray(W_sc_pad_T),
        "W_fc_pad_T": jnp.asarray(W_fc_pad_T),
        "ho_a": jnp.asarray(ho_a),
        "ho_b": jnp.asarray(ho_b),
        # LSTM, gate order (i, f, g, o) as in PyTorch; gates fused on lane axis
        "lstm_W_ih_T": jnp.asarray(W_ih.T),                              # (R, 4H)
        "lstm_W_hh_T": jnp.asarray(W_hh.T),                              # (H, 4H)
        "lstm_b": jnp.asarray((b_ih + b_hh).reshape(1, 4 * LSTM_HIDDEN)),
        "W_out_T": jnp.asarray(W_out.T),                                 # (H, O)
        "b_out": jnp.asarray(b_out).reshape(1, OUTPUT_SIZE),
        # plain copies for the pure-JAX reference
        "_W_in": jnp.asarray(W_in), "_W_core": jnp.asarray(W_core),
        "_W_shell": jnp.asarray(W_shell), "_W_feedback": jnp.asarray(W_feedback),
        "_W_shell_core": jnp.asarray(W_shell_core),
        "_W_feedback_core": jnp.asarray(W_feedback_core),
        "_omega": jnp.asarray(omega), "_gamma": jnp.asarray(gamma),
        "_dopamine": jnp.asarray(dopamine),
        "_W_ih": jnp.asarray(W_ih), "_W_hh": jnp.asarray(W_hh),
        "_b_ih": jnp.asarray(b_ih), "_b_hh": jnp.asarray(b_hh),
        "_W_out": jnp.asarray(W_out), "_b_out": jnp.asarray(b_out),
    }
    return p


# ----------------------- pure-JAX reference (for checking) -------------------
def reference_forward(p, x, state, lstm_hidden, lstm_cell):
    mm = lambda a, b: jnp.matmul(a, b, precision=_HI)
    reservoir_in = mm(p["_W_in"], x)
    core = state[:, :CORE]
    shell = state[:, CORE:CORE + SHELL]
    fb = state[:, -FBACK:]
    core_pred = jnp.tanh(mm(p["_W_core"], core.T).T + reservoir_in[:CORE][None, :])
    shell_pred = jnp.tanh(mm(p["_W_shell"], shell.T)).T
    fb_pred = jnp.tanh(mm(p["_W_feedback"], fb.T)).T
    core_pred = core_pred + jnp.tanh(mm(p["_W_shell_core"], shell_pred.T)).T
    core_pred = core_pred + jnp.tanh(mm(p["_W_feedback_core"], fb_pred.T)).T
    core_new = (1 - LEAK_RATE) * core + LEAK_RATE * core_pred
    shell_new = (1 - LEAK_RATE) * shell + LEAK_RATE * shell_pred
    fb_new = (1 - LEAK_RATE) * fb + LEAK_RATE * fb_pred
    combined = jnp.concatenate([core_new, shell_new, fb_new], axis=1)
    ho = p["_omega"] * combined - p["_gamma"] * jnp.tanh(combined)
    combined = p["_dopamine"] * (combined + 0.1 * ho)
    h = lstm_hidden.reshape(1, LSTM_HIDDEN)
    c = lstm_cell.reshape(1, LSTM_HIDDEN)
    gates = mm(combined, p["_W_ih"].T) + mm(h, p["_W_hh"].T) + p["_b_ih"] + p["_b_hh"]
    i, f, g, o = jnp.split(gates, 4, axis=1)
    i, f, g, o = jax.nn.sigmoid(i), jax.nn.sigmoid(f), jnp.tanh(g), jax.nn.sigmoid(o)
    c_new = f * c + i * g
    h_new = o * jnp.tanh(c_new)
    out = mm(h_new, p["_W_out"].T) + p["_b_out"]
    return out, combined, h_new.reshape(1, 1, -1), c_new.reshape(1, 1, -1)


# --------------------------------- main --------------------------------------
if __name__ == "__main__":
    params = init_params(seed=0)

    key = jax.random.PRNGKey(0)
    kx, ks, kh, kc = jax.random.split(key, 4)
    x = jax.random.uniform(kx, (INPUT_SIZE,), jnp.float32, -1.0, 1.0)
    state = jax.random.uniform(ks, (1, RESERVOIR_SIZE), jnp.float32, -0.5, 0.5)
    lstm_hidden = jax.random.uniform(kh, (1, 1, LSTM_HIDDEN), jnp.float32, -0.5, 0.5)
    lstm_cell = jax.random.uniform(kc, (1, 1, LSTM_HIDDEN), jnp.float32, -0.5, 0.5)

    out, new_state, new_h, new_c = bio_esn_forward(params, x, state, lstm_hidden, lstm_cell)
    jax.block_until_ready((out, new_state, new_h, new_c))

    # sanity-check against a pure-JAX reference of the same math (tight f32 tol)
    r_out, r_state, r_h, r_c = reference_forward(params, x, state, lstm_hidden, lstm_cell)
    np.testing.assert_allclose(np.asarray(out), np.asarray(r_out), rtol=1e-5, atol=1e-5)
    np.testing.assert_allclose(np.asarray(new_state), np.asarray(r_state), rtol=1e-5, atol=1e-5)
    np.testing.assert_allclose(np.asarray(new_h), np.asarray(r_h), rtol=1e-5, atol=1e-5)
    np.testing.assert_allclose(np.asarray(new_c), np.asarray(r_c), rtol=1e-5, atol=1e-5)

    print("KERNEL_OK")
</pallas_src>

<mosaic_0001>
module attributes {stable_mosaic.version = 11 : i64} {
  func.func @bio_esn_kernel(%arg0: memref<1x1xf32, #tpu.memory_space<smem>>, %arg1: memref<1x40xf32, #tpu.memory_space<vmem>>, %arg2: memref<1x32xf32, #tpu.memory_space<vmem>>, %arg3: memref<1x32xf32, #tpu.memory_space<vmem>>, %arg4: memref<1x40xf32, #tpu.memory_space<vmem>>, %arg5: memref<40x40xf32, #tpu.memory_space<vmem>>, %arg6: memref<40x40xf32, #tpu.memory_space<vmem>>, %arg7: memref<40x40xf32, #tpu.memory_space<vmem>>, %arg8: memref<1x40xf32, #tpu.memory_space<vmem>>, %arg9: memref<1x40xf32, #tpu.memory_space<vmem>>, %arg10: memref<40x128xf32, #tpu.memory_space<vmem>>, %arg11: memref<32x128xf32, #tpu.memory_space<vmem>>, %arg12: memref<1x128xf32, #tpu.memory_space<vmem>>, %arg13: memref<32x4xf32, #tpu.memory_space<vmem>>, %arg14: memref<1x4xf32, #tpu.memory_space<vmem>>, %arg15: memref<1x4xf32, #tpu.memory_space<vmem>>, %arg16: memref<1x40xf32, #tpu.memory_space<vmem>>, %arg17: memref<1x32xf32, #tpu.memory_space<vmem>>, %arg18: memref<1x32xf32, #tpu.memory_space<vmem>>) attributes {dimension_semantics = [], scalar_prefetch = 0 : i64, scratch_operands = 0 : i64, tpu.core_type = #tpu.core_type<tc>} {
    %c0 = arith.constant 0 : index
    %c0_0 = arith.constant 0 : index
    %0 = memref.load %arg0[%c0, %c0_0] : memref<1x1xf32, #tpu.memory_space<smem>>
    %c0_1 = arith.constant 0 : index
    %c0_2 = arith.constant 0 : index
    %1 = vector.load %arg1[%c0_1, %c0_2] : memref<1x40xf32, #tpu.memory_space<vmem>>, vector<1x40xf32>
    %c0_3 = arith.constant 0 : index
    %c0_4 = arith.constant 0 : index
    %2 = vector.load %arg2[%c0_3, %c0_4] : memref<1x32xf32, #tpu.memory_space<vmem>>, vector<1x32xf32>
    %c0_5 = arith.constant 0 : index
    %c0_6 = arith.constant 0 : index
    %3 = vector.load %arg3[%c0_5, %c0_6] : memref<1x32xf32, #tpu.memory_space<vmem>>, vector<1x32xf32>
    %c0_7 = arith.constant 0 : index
    %c0_8 = arith.constant 0 : index
    %4 = vector.load %arg5[%c0_7, %c0_8] : memref<40x40xf32, #tpu.memory_space<vmem>>, vector<40x40xf32>
    %cst = arith.constant dense<0.000000e+00> : vector<1x40xf32>
    %5 = tpu.matmul %1, %4, %cst {dimension_numbers = #tpu.dot_dimension_numbers<[1], [0], [0], [1], [0, 0, 1, 1], [], []>, precision = #tpu.contract_precision<fp32>} : vector<1x40xf32>, vector<40x40xf32>, vector<1x40xf32> -> vector<1x40xf32>
    %c0_9 = arith.constant 0 : index
    %c0_10 = arith.constant 0 : index
    %6 = vector.load %arg4[%c0_9, %c0_10] : memref<1x40xf32, #tpu.memory_space<vmem>>, vector<1x40xf32>
    %7 = vector.broadcast %0 : f32 to vector<1x40xf32>
    %8 = arith.mulf %7, %6 : vector<1x40xf32>
    %9 = arith.addf %5, %8 : vector<1x40xf32>
    %10 = math.tanh %9 : vector<1x40xf32>
    %c0_11 = arith.constant 0 : index
    %c0_12 = arith.constant 0 : index
    %11 = vector.load %arg6[%c0_11, %c0_12] : memref<40x40xf32, #tpu.memory_space<vmem>>, vector<40x40xf32>
    %cst_13 = arith.constant dense<0.000000e+00> : vector<1x40xf32>
    %12 = tpu.matmul %10, %11, %cst_13 {dimension_numbers = #tpu.dot_dimension_numbers<[1], [0], [0], [1], [0, 0, 1, 1], [], []>, precision = #tpu.contract_precision<fp32>} : vector<1x40xf32>, vector<40x40xf32>, vector<1x40xf32> -> vector<1x40xf32>
    %13 = math.tanh %12 : vector<1x40xf32>
    %14 = arith.addf %10, %13 : vector<1x40xf32>
    %c0_14 = arith.constant 0 : index
    %c0_15 = arith.constant 0 : index
    %15 = vector.load %arg7[%c0_14, %c0_15] : memref<40x40xf32, #tpu.memory_space<vmem>>, vector<40x40xf32>
    %cst_16 = arith.constant dense<0.000000e+00> : vector<1x40xf32>
    %16 = tpu.matmul %10, %15, %cst_16 {dimension_numbers = #tpu.dot_dimension_numbers<[1], [0], [0], [1], [0, 0, 1, 1], [], []>, precision = #tpu.contract_precision<fp32>} : vector<1x40xf32>, vector<40x40xf32>, vector<1x40xf32> -> vector<1x40xf32>
    %17 = math.tanh %16 : vector<1x40xf32>
    %18 = arith.addf %14, %17 : vector<1x40xf32>
    %cst_17 = arith.constant 0.899999976 : f32
    %19 = vector.broadcast %cst_17 : f32 to vector<1x40xf32>
    %20 = arith.mulf %19, %1 : vector<1x40xf32>
    %cst_18 = arith.constant 1.000000e-01 : f32
    %21 = vector.broadcast %cst_18 : f32 to vector<1x40xf32>
    %22 = arith.mulf %21, %18 : vector<1x40xf32>
    %23 = arith.addf %20, %22 : vector<1x40xf32>
    %c0_19 = arith.constant 0 : index
    %c0_20 = arith.constant 0 : index
    %24 = vector.load %arg8[%c0_19, %c0_20] : memref<1x40xf32, #tpu.memory_space<vmem>>, vector<1x40xf32>
    %25 = arith.mulf %24, %23 : vector<1x40xf32>
    %c0_21 = arith.constant 0 : index
    %c0_22 = arith.constant 0 : index
    %26 = vector.load %arg9[%c0_21, %c0_22] : memref<1x40xf32, #tpu.memory_space<vmem>>, vector<1x40xf32>
    %27 = math.tanh %23 : vector<1x40xf32>
    %28 = arith.mulf %26, %27 : vector<1x40xf32>
    %29 = arith.subf %25, %28 : vector<1x40xf32>
    %c0_23 = arith.constant 0 : index
    %c0_24 = arith.constant 0 : index
    %30 = vector.load %arg10[%c0_23, %c0_24] : memref<40x128xf32, #tpu.memory_space<vmem>>, vector<40x128xf32>
    %cst_25 = arith.constant dense<0.000000e+00> : vector<1x128xf32>
    %31 = tpu.matmul %29, %30, %cst_25 {dimension_numbers = #tpu.dot_dimension_numbers<[1], [0], [0], [1], [0, 0, 1, 1], [], []>, precision = #tpu.contract_precision<fp32>} : vector<1x40xf32>, vector<40x128xf32>, vector<1x128xf32> -> vector<1x128xf32>
    %c0_26 = arith.constant 0 : index
    %c0_27 = arith.constant 0 : index
    %32 = vector.load %arg11[%c0_26, %c0_27] : memref<32x128xf32, #tpu.memory_space<vmem>>, vector<32x128xf32>
    %cst_28 = arith.constant dense<0.000000e+00> : vector<1x128xf32>
    %33 = tpu.matmul %2, %32, %cst_28 {dimension_numbers = #tpu.dot_dimension_numbers<[1], [0], [0], [1], [0, 0, 1, 1], [], []>, precision = #tpu.contract_precision<fp32>} : vector<1x32xf32>, vector<32x128xf32>, vector<1x128xf32> -> vector<1x128xf32>
    %34 = arith.addf %31, %33 : vector<1x128xf32>
    %c0_29 = arith.constant 0 : index
    %c0_30 = arith.constant 0 : index
    %35 = vector.load %arg12[%c0_29, %c0_30] : memref<1x128xf32, #tpu.memory_space<vmem>>, vector<1x128xf32>
    %36 = arith.addf %34, %35 : vector<1x128xf32>
    %37 = vector.extract_strided_slice %36 {offsets = [0, 0], sizes = [1, 32], strides = [1, 1]} : vector<1x128xf32> to vector<1x32xf32>
    %38 = arith.negf %37 : vector<1x32xf32>
    %39 = math.exp %38 : vector<1x32xf32>
    %cst_31 = arith.constant 1.000000e+00 : f32
    %40 = vector.broadcast %cst_31 : f32 to vector<1x32xf32>
    %41 = arith.addf %40, %39 : vector<1x32xf32>
    %42 = arith.divf %40, %41 : vector<1x32xf32>
    %43 = vector.extract_strided_slice %36 {offsets = [0, 32], sizes = [1, 32], strides = [1, 1]} : vector<1x128xf32> to vector<1x32xf32>
    %44 = arith.negf %43 : vector<1x32xf32>
    %45 = math.exp %44 : vector<1x32xf32>
    %cst_32 = arith.constant 1.000000e+00 : f32
    %46 = vector.broadcast %cst_32 : f32 to vector<1x32xf32>
    %47 = arith.addf %46, %45 : vector<1x32xf32>
    %48 = arith.divf %46, %47 : vector<1x32xf32>
    %49 = vector.extract_strided_slice %36 {offsets = [0, 64], sizes = [1, 32], strides = [1, 1]} : vector<1x128xf32> to vector<1x32xf32>
    %50 = math.tanh %49 : vector<1x32xf32>
    %51 = vector.extract_strided_slice %36 {offsets = [0, 96], sizes = [1, 32], strides = [1, 1]} : vector<1x128xf32> to vector<1x32xf32>
    %52 = arith.negf %51 : vector<1x32xf32>
    %53 = math.exp %52 : vector<1x32xf32>
    %cst_33 = arith.constant 1.000000e+00 : f32
    %54 = vector.broadcast %cst_33 : f32 to vector<1x32xf32>
    %55 = arith.addf %54, %53 : vector<1x32xf32>
    %56 = arith.divf %54, %55 : vector<1x32xf32>
    %57 = arith.mulf %48, %3 : vector<1x32xf32>
    %58 = arith.mulf %42, %50 : vector<1x32xf32>
    %59 = arith.addf %57, %58 : vector<1x32xf32>
    %60 = math.tanh %59 : vector<1x32xf32>
    %61 = arith.mulf %56, %60 : vector<1x32xf32>
    %c0_34 = arith.constant 0 : index
    %c0_35 = arith.constant 0 : index
    %62 = vector.load %arg13[%c0_34, %c0_35] : memref<32x4xf32, #tpu.memory_space<vmem>>, vector<32x4xf32>
    %cst_36 = arith.constant dense<0.000000e+00> : vector<1x4xf32>
    %63 = tpu.matmul %61, %62, %cst_36 {dimension_numbers = #tpu.dot_dimension_numbers<[1], [0], [0], [1], [0, 0, 1, 1], [], []>, precision = #tpu.contract_precision<fp32>} : vector<1x32xf32>, vector<32x4xf32>, vector<1x4xf32> -> vector<1x4xf32>
    %c0_37 = arith.constant 0 : index
    %c0_38 = arith.constant 0 : index
    %64 = vector.load %arg14[%c0_37, %c0_38] : memref<1x4xf32, #tpu.memory_space<vmem>>, vector<1x4xf32>
    %65 = arith.addf %63, %64 : vector<1x4xf32>
    %c0_39 = arith.constant 0 : index
    %c0_40 = arith.constant 0 : index
    %66 = vector.load %arg15[%c0_39, %c0_40] : memref<1x4xf32, #tpu.memory_space<vmem>>, vector<1x4xf32>
    tpu.vector_store %arg15[%c0_39, %c0_40], %65 {strides = array<i32>} : memref<1x4xf32, #tpu.memory_space<vmem>>, vector<1x4xf32>,
    %c0_41 = arith.constant 0 : index
    %c0_42 = arith.constant 0 : index
    %67 = vector.load %arg16[%c0_41, %c0_42] : memref<1x40xf32, #tpu.memory_space<vmem>>, vector<1x40xf32>
    tpu.vector_store %arg16[%c0_41, %c0_42], %29 {strides = array<i32>} : memref<1x40xf32, #tpu.memory_space<vmem>>, vector<1x40xf32>,
    %c0_43 = arith.constant 0 : index
    %c0_44 = arith.constant 0 : index
    %68 = vector.load %arg17[%c0_43, %c0_44] : memref<1x32xf32, #tpu.memory_space<vmem>>, vector<1x32xf32>
    tpu.vector_store %arg17[%c0_43, %c0_44], %61 {strides = array<i32>} : memref<1x32xf32, #tpu.memory_space<vmem>>, vector<1x32xf32>,
    %c0_45 = arith.constant 0 : index
    %c0_46 = arith.constant 0 : index
    %69 = vector.load %arg18[%c0_45, %c0_46] : memref<1x32xf32, #tpu.memory_space<vmem>>, vector<1x32xf32>
    tpu.vector_store %arg18[%c0_45, %c0_46], %59 {strides = array<i32>} : memref<1x32xf32, #tpu.memory_space<vmem>>, vector<1x32xf32>,
    return
  }
}

</mosaic_0001>

<llo_original>
// kernel: tpu_custom_call.1
$region0: #{tpu_custom_call.1}
  #allocation0 [shape = 'u32[]', space=smem, size = 0x4, offset = 0x4, fixed_abs, tag = 'smem constant byte address 0x4 - core index']
  #allocation1 [shape = 'u32[72,128]{1,0:T(1,128)}', space=vmem, size = 0x9000, scoped, tag = 'internal scratch']
  #allocation2 [shape = 'f32[1,1]{1,0:T(1,128)S(6)}', space=smem, size = 0x200, scoped, tag = 'scoped memory for tpu_custom_call.1']
  %s0 = inlined_call_operand.<no memory space> [shape: f32[1,1], index: 0, kind: input, shape index: {}]
  %s1 = inlined_call_operand.vmem [shape: f32[1,40], index: 1, kind: input, shape index: {}]
  %s2 = inlined_call_operand.vmem [shape: f32[1,32], index: 2, kind: input, shape index: {}]
  %s3 = inlined_call_operand.vmem [shape: f32[1,32], index: 3, kind: input, shape index: {}]
  %s4 = inlined_call_operand.vmem [shape: f32[1,40], index: 4, kind: input, shape index: {}]
  %s5 = inlined_call_operand.hbm [shape: f32[40,40], index: 5, kind: input, shape index: {}]
  %s6 = inlined_call_operand.hbm [shape: f32[40,40], index: 6, kind: input, shape index: {}]
  %s7 = inlined_call_operand.hbm [shape: f32[40,40], index: 7, kind: input, shape index: {}]
  %s8 = inlined_call_operand.vmem [shape: f32[1,40], index: 8, kind: input, shape index: {}]
  %s9 = inlined_call_operand.vmem [shape: f32[1,40], index: 9, kind: input, shape index: {}]
  %s10 = inlined_call_operand.hbm [shape: f32[40,128], index: 10, kind: input, shape index: {}]
  %s11 = inlined_call_operand.vmem [shape: f32[32,128], index: 11, kind: input, shape index: {}]
  %s12 = inlined_call_operand.vmem [shape: f32[1,128], index: 12, kind: input, shape index: {}]
  %s13 = inlined_call_operand.vmem [shape: f32[32,4], index: 13, kind: input, shape index: {}]
  %s14 = inlined_call_operand.vmem [shape: f32[1,4], index: 14, kind: input, shape index: {}]
  %s15 = inlined_call_operand.hbm [shape: f32[1,4], index: 15, kind: output, shape index: {0}]
  %s16 = inlined_call_operand.hbm [shape: f32[1,40], index: 16, kind: output, shape index: {1}]
  %s17 = inlined_call_operand.hbm [shape: f32[1,32], index: 17, kind: output, shape index: {2}]
  %s18 = inlined_call_operand.hbm [shape: f32[1,32], index: 18, kind: output, shape index: {3}]
  %19 = xla_tuple %s15, %s16, %s17, %s18
  %s20 = sld [smem:[#allocation0]]
  $region110: #{tpu_custom_call.1} parent=0
    _
  %s22 = ssub.s32 1, %s20
  %s23 = scalar_select 0, %s22, %s20
  %24 = sst [smem:[#allocation2]] %s0
  $region1: #{tpu_custom_call.1} parent=0
    #allocation3 [shape = 'u8[20480]{0}', space=vmem, size = 0x5000, scoped, tag = 'input window, operand 5, single buffered']
    #allocation4 [shape = 's32[1]{0}', space=sflag, size = 0x4, scoped, tag = 'scoped memory for tpu_custom_call.1']
    #allocation5 [shape = 's32[1]{0}', space=sflag, size = 0x4, scoped, tag = 'scoped memory for tpu_custom_call.1']
    #allocation6 [shape = 'u8[20480]{0}', space=vmem, size = 0x5000, scoped, tag = 'input window, operand 6, single buffered']
    #allocation7 [shape = 's32[1]{0}', space=sflag, size = 0x4, scoped, tag = 'scoped memory for tpu_custom_call.1']
    #allocation8 [shape = 'u8[20480]{0}', space=vmem, size = 0x5000, scoped, tag = 'input window, operand 7, single buffered']
    #allocation9 [shape = 'u8[20480]{0}', space=vmem, size = 0x5000, scoped, tag = 'input window, operand 10, single buffered']
    #allocation10 [shape = 's32[1]{0}', space=sflag, size = 0x4, scoped, tag = 'scoped memory for tpu_custom_call.1']
    #allocation11 [shape = 'u8[512]{0}', space=vmem, size = 0x400, scoped, tag = 'output window, operand 0, single buffered']
    #allocation12 [shape = 'u8[512]{0}', space=vmem, size = 0x400, scoped, tag = 'output window, operand 1, single buffered']
    #allocation13 [shape = 's32[1]{0}', space=sflag, size = 0x4, scoped, tag = 'scoped memory for tpu_custom_call.1']
    #allocation14 [shape = 'u8[512]{0}', space=vmem, size = 0x400, scoped, tag = 'output window, operand 2, single buffered']
    #allocation15 [shape = 'u8[512]{0}', space=vmem, size = 0x400, scoped, tag = 'output window, operand 3, single buffered']
    #allocation16 [shape = 's32[1]{0}', space=sflag, size = 0x4, scoped, tag = 'scoped memory for tpu_custom_call.1']
    %25 = vsyncpa [#allocation4], 0
    %26 = vsyncpa [#allocation7], 0
    %27 = vsyncpa [#allocation10], 0
    %28 = vsyncpa [#allocation5], 0
    %29 = vsyncpa [#allocation13], 0
    %30 = vsyncpa [#allocation16], 0
    // Predicated region
    $region2: #{tpu_custom_call.1} parent=1 // pred_check
      _
    $region3: #{tpu_custom_call.1} parent=1 // pred_check_branch
      %32 = sbr.rel (0) target = $region5
    $region4: #{tpu_custom_call.1} parent=1 // pred_region
      _
    $region5: #{tpu_custom_call.1} parent=1 // pred_fallthru
      _
    // Predicated region
    $region6: #{tpu_custom_call.1} parent=1 // pred_check
      _
    $region7: #{tpu_custom_call.1} parent=1 // pred_check_branch
      %34 = sbr.rel (0) target = $region9
    $region8: #{tpu_custom_call.1} parent=1 // pred_region
      _
    $region9: #{tpu_custom_call.1} parent=1 // pred_fallthru
      _
    // Predicated region
    $region10: #{tpu_custom_call.1} parent=1 // pred_check
      _
    $region11: #{tpu_custom_call.1} parent=1 // pred_check_branch
      %36 = sbr.rel (0) target = $region13
    $region12: #{tpu_custom_call.1} parent=1 // pred_region
      _
    $region13: #{tpu_custom_call.1} parent=1 // pred_fallthru
      _
    // Predicated region
    $region14: #{tpu_custom_call.1} parent=1 // pred_check
      _
    $region15: #{tpu_custom_call.1} parent=1 // pred_check_branch
      %38 = sbr.rel (0) target = $region17
    $region16: #{tpu_custom_call.1} parent=1 // pred_region
      _
    $region17: #{tpu_custom_call.1} parent=1 // pred_fallthru
      _
    // Predicated region
    $region18: #{tpu_custom_call.1} parent=1 // pred_check
      _
    $region19: #{tpu_custom_call.1} parent=1 // pred_check_branch
      %40 = sbr.rel (0) target = $region21
    $region20: #{tpu_custom_call.1} parent=1 // pred_region
      _
    $region21: #{tpu_custom_call.1} parent=1 // pred_fallthru
      _
    // Predicated region
    $region22: #{tpu_custom_call.1} parent=1 // pred_check
      _
    $region23: #{tpu_custom_call.1} parent=1 // pred_check_branch
      %42 = sbr.rel (0) target = $region25
    $region24: #{tpu_custom_call.1} parent=1 // pred_region
      %44 = vsyncadd [#allocation4], 0
      %s45 = sshll.u32 %s5, 4
      %s46 = int_to_ptr.hbm [resolvable:$true] %s45
      %s47 = sshll.u32 [#allocation3], 4
      %s48 = int_to_ptr.vmem [resolvable:$true] %s47
      %53 = dma.hbm_to_vmem [thread:$0]  %s46, 640, %s48, [#allocation4], 128, 128, 8
    $region25: #{tpu_custom_call.1} parent=1 // pred_fallthru
      _
    // Predicated region
    $region26: #{tpu_custom_call.1} parent=1 // pred_check
      _
    $region27: #{tpu_custom_call.1} parent=1 // pred_check_branch
      %55 = sbr.rel (0) target = $region29
    $region28: #{tpu_custom_call.1} parent=1 // pred_region
      %57 = vsyncadd [#allocation7], 0
      %s58 = sshll.u32 %s6, 4
      %s59 = int_to_ptr.hbm [resolvable:$true] %s58
      %s60 = sshll.u32 [#allocation6], 4
      %s61 = int_to_ptr.vmem [resolvable:$true] %s60
      %66 = dma.hbm_to_vmem [thread:$0]  %s59, 640, %s61, [#allocation7], 128, 128, 8
    $region29: #{tpu_custom_call.1} parent=1 // pred_fallthru
      _
    // Predicated region
    $region30: #{tpu_custom_call.1} parent=1 // pred_check
      _
    $region31: #{tpu_custom_call.1} parent=1 // pred_check_branch
      %68 = sbr.rel (0) target = $region33
    $region32: #{tpu_custom_call.1} parent=1 // pred_region
      %70 = vsyncadd [#allocation7], 0
      %s71 = sshll.u32 %s7, 4
      %s72 = int_to_ptr.hbm [resolvable:$true] %s71
      %s73 = sshll.u32 [#allocation8], 4
      %s74 = int_to_ptr.vmem [resolvable:$true] %s73
      %79 = dma.hbm_to_vmem [thread:$0]  %s72, 640, %s74, [#allocation7], 128, 128, 8
    $region33: #{tpu_custom_call.1} parent=1 // pred_fallthru
      _
    // Predicated region
    $region34: #{tpu_custom_call.1} parent=1 // pred_check
      _
    $region35: #{tpu_custom_call.1} parent=1 // pred_check_branch
      %81 = sbr.rel (0) target = $region37
    $region36: #{tpu_custom_call.1} parent=1 // pred_region
      _
    $region37: #{tpu_custom_call.1} parent=1 // pred_fallthru
      _
    // Predicated region
    $region38: #{tpu_custom_call.1} parent=1 // pred_check
      _
    $region39: #{tpu_custom_call.1} parent=1 // pred_check_branch
      %83 = sbr.rel (0) target = $region41
    $region40: #{tpu_custom_call.1} parent=1 // pred_region
      _
    $region41: #{tpu_custom_call.1} parent=1 // pred_fallthru
      _
    // Predicated region
    $region42: #{tpu_custom_call.1} parent=1 // pred_check
      _
    $region43: #{tpu_custom_call.1} parent=1 // pred_check_branch
      %85 = sbr.rel (0) target = $region45
    $region44: #{tpu_custom_call.1} parent=1 // pred_region
      %87 = vsyncadd [#allocation10], 0
      %s88 = sshll.u32 %s10, 4
      %s89 = int_to_ptr.hbm [resolvable:$true] %s88
      %s90 = sshll.u32 [#allocation9], 4
      %s91 = int_to_ptr.vmem [resolvable:$true] %s90
      %96 = dma.hbm_to_vmem [thread:$0]  %s89, 640, %s91, [#allocation10], 128, 128, 8
    $region45: #{tpu_custom_call.1} parent=1 // pred_fallthru
      _
    // Predicated region
    $region46: #{tpu_custom_call.1} parent=1 // pred_check
      _
    $region47: #{tpu_custom_call.1} parent=1 // pred_check_branch
      %98 = sbr.rel (0) target = $region49
    $region48: #{tpu_custom_call.1} parent=1 // pred_region
      _
    $region49: #{tpu_custom_call.1} parent=1 // pred_fallthru
      _
    // Predicated region
    $region50: #{tpu_custom_call.1} parent=1 // pred_check
      _
    $region51: #{tpu_custom_call.1} parent=1 // pred_check_branch
      %100 = sbr.rel (0) target = $region53
    $region52: #{tpu_custom_call.1} parent=1 // pred_region
      _
    $region53: #{tpu_custom_call.1} parent=1 // pred_fallthru
      _
    // Predicated region
    $region54: #{tpu_custom_call.1} parent=1 // pred_check
      _
    $region55: #{tpu_custom_call.1} parent=1 // pred_check_branch
      %102 = sbr.rel (0) target = $region57
    $region56: #{tpu_custom_call.1} parent=1 // pred_region
      _
    $region57: #{tpu_custom_call.1} parent=1 // pred_fallthru
      _
    // Predicated region
    $region58: #{tpu_custom_call.1} parent=1 // pred_check
      _
    $region59: #{tpu_custom_call.1} parent=1 // pred_check_branch
      %104 = sbr.rel (0) target = $region61
    $region60: #{tpu_custom_call.1} parent=1 // pred_region
      _
    $region61: #{tpu_custom_call.1} parent=1 // pred_fallthru
      _
    // Predicated region
    $region62: #{tpu_custom_call.1} parent=1 // pred_check
      _
    $region63: #{tpu_custom_call.1} parent=1 // pred_check_branch
      %106 = sbr.rel (0) target = $region65
    $region64: #{tpu_custom_call.1} parent=1 // pred_region
      %108 = dma.done [#allocation4], 640
    $region65: #{tpu_custom_call.1} parent=1 // pred_fallthru
      _
    // Predicated region
    $region66: #{tpu_custom_call.1} parent=1 // pred_check
      _
    $region67: #{tpu_custom_call.1} parent=1 // pred_check_branch
      %110 = sbr.rel (0) target = $region69
    $region68: #{tpu_custom_call.1} parent=1 // pred_region
      %112 = dma.done [#allocation7], 640
    $region69: #{tpu_custom_call.1} parent=1 // pred_fallthru
      _
    // Predicated region
    $region70: #{tpu_custom_call.1} parent=1 // pred_check
      _
    $region71: #{tpu_custom_call.1} parent=1 // pred_check_branch
      %114 = sbr.rel (0) target = $region73
    $region72: #{tpu_custom_call.1} parent=1 // pred_region
      %116 = dma.done [#allocation7], 640
    $region73: #{tpu_custom_call.1} parent=1 // pred_fallthru
      _
    // Predicated region
    $region74: #{tpu_custom_call.1} parent=1 // pred_check
      _
    $region75: #{tpu_custom_call.1} parent=1 // pred_check_branch
      %118 = sbr.rel (0) target = $region77
    $region76: #{tpu_custom_call.1} parent=1 // pred_region
      %120 = dma.done [#allocation10], 640
    $region77: #{tpu_custom_call.1} parent=1 // pred_fallthru
      _
    %s121 = sld [smem:[#allocation2]]
    %v122 = vld [vmem:[%s1] sm:$0x1]
    %v123 = vld [vmem:[%s2] sm:$0x1]
    %v124 = vld [vmem:[%s3] sm:$0x1]
    %v125 = vld [vmem:[#allocation3] sm:$0xff]
    %v126 = vld [vmem:[#allocation3 + $0x8] sm:$0xff]
    %v127 = vld [vmem:[#allocation3 + $0x10] sm:$0xff]
    %v128 = vld [vmem:[#allocation3 + $0x18] sm:$0xff]
    %v129 = vld [vmem:[#allocation3 + $0x20] sm:$0xff]
    %v130 = vld [vmem:[%s4] sm:$0x1]
    %v131 = vstv %s121
    %v132 = vmul.f32 %v131, %v130
    %vm133 = vcmask 326656
    %v135 = vsel %vm133, %v122, 0
    %137 = vmatpush.msra.mxu0 0.0
    %138 = vmatpush.msra.mxu0 0.0
    %139 = vmatpush.msra.mxu0 0.0
    %140 = vmatpush.msra.mxu0 0.0
    %141 = vmatpush.msra.mxu0 0.0
    %142 = vmatpush.msra.mxu0 0.0
    %143 = vmatpush.msra.mxu0 0.0
    %144 = vmatpush.msra.mxu0 0.0
    %145 = vmatpush.msra.mxu0 0.0
    %146 = vmatpush.msra.mxu0 0.0
    %147 = vmatpush.msra.mxu0 0.0
    %v148 = vand.u32 %v129, 4294901760
    %149 = vmatpush.msra.mxu0 %v148
    %v150 = vand.u32 %v128, 4294901760
    %151 = vmatpush.msra.mxu0 %v150
    %v152 = vand.u32 %v127, 4294901760
    %153 = vmatpush.msra.mxu0 %v152
    %v154 = vand.u32 %v126, 4294901760
    %155 = vmatpush.msra.mxu0 %v154
    %v156 = vand.u32 %v125, 4294901760
    %157 = vmatpush.msra.mxu0 %v156
    %v158 = vand.u32 %v135, 4294901760
    %v159 = vsub.f32 %v135, %v158
    %v160 = vand.u32 %v159, 4294901760
    %v161 = vsub.f32 %v159, %v160
    %v162 = vand.u32 %v161, 4294901760
    %163 = vmatmul.f32.gmra.mxu0 %v162
    %v164 = vpop.f32.mrf.mxu0
    %v165 = vadd.f32 %v132, %v164
    %166 = vdwg.mxu0
    %167 = vmatpush.msra.mxu0 0.0
    %168 = vmatpush.msra.mxu0 0.0
    %169 = vmatpush.msra.mxu0 0.0
    %170 = vmatpush.msra.mxu0 0.0
    %171 = vmatpush.msra.mxu0 0.0
    %172 = vmatpush.msra.mxu0 0.0
    %173 = vmatpush.msra.mxu0 0.0
    %174 = vmatpush.msra.mxu0 0.0
    %175 = vmatpush.msra.mxu0 0.0
    %176 = vmatpush.msra.mxu0 0.0
    %177 = vmatpush.msra.mxu0 0.0
    %v178 = vand.u32 %v129, 4294901760
    %v179 = vsub.f32 %v129, %v178
    %v180 = vand.u32 %v179, 4294901760
    %v181 = vsub.f32 %v179, %v180
    %v182 = vand.u32 %v181, 4294901760
    %183 = vmatpush.msra.mxu0 %v182
    %v184 = vand.u32 %v128, 4294901760
    %v185 = vsub.f32 %v128, %v184
    %v186 = vand.u32 %v185, 4294901760
    %v187 = vsub.f32 %v185, %v186
    %v188 = vand.u32 %v187, 4294901760
    %189 = vmatpush.msra.mxu0 %v188
    %v190 = vand.u32 %v127, 4294901760
    %v191 = vsub.f32 %v127, %v190
    %v192 = vand.u32 %v191, 4294901760
    %v193 = vsub.f32 %v191, %v192
    %v194 = vand.u32 %v193, 4294901760
    %195 = vmatpush.msra.mxu0 %v194
    %v196 = vand.u32 %v126, 4294901760
    %v197 = vsub.f32 %v126, %v196
    %v198 = vand.u32 %v197, 4294901760
    %v199 = vsub.f32 %v197, %v198
    %v200 = vand.u32 %v199, 4294901760
    %201 = vmatpush.msra.mxu0 %v200
    %v202 = vand.u32 %v125, 4294901760
    %v203 = vsub.f32 %v125, %v202
    %v204 = vand.u32 %v203, 4294901760
    %v205 = vsub.f32 %v203, %v204
    %v206 = vand.u32 %v205, 4294901760
    %207 = vmatpush.msra.mxu0 %v206
    %v208 = vand.u32 %v135, 4294901760
    %209 = vmatmul.f32.gmra.mxu0 %v208
    %v210 = vpop.f32.mrf.mxu0
    %v211 = vadd.f32 %v165, %v210
    %212 = vdwg.mxu0
    %213 = vmatpush.msra.mxu0 0.0
    %214 = vmatpush.msra.mxu0 0.0
    %215 = vmatpush.msra.mxu0 0.0
    %216 = vmatpush.msra.mxu0 0.0
    %217 = vmatpush.msra.mxu0 0.0
    %218 = vmatpush.msra.mxu0 0.0
    %219 = vmatpush.msra.mxu0 0.0
    %220 = vmatpush.msra.mxu0 0.0
    %221 = vmatpush.msra.mxu0 0.0
    %222 = vmatpush.msra.mxu0 0.0
    %223 = vmatpush.msra.mxu0 0.0
    %v224 = vand.u32 %v129, 4294901760
    %v225 = vsub.f32 %v129, %v224
    %226 = vmatpush.msra.mxu0 %v225
    %v227 = vand.u32 %v128, 4294901760
    %v228 = vsub.f32 %v128, %v227
    %229 = vmatpush.msra.mxu0 %v228
    %v230 = vand.u32 %v127, 4294901760
    %v231 = vsub.f32 %v127, %v230
    %232 = vmatpush.msra.mxu0 %v231
    %v233 = vand.u32 %v126, 4294901760
    %v234 = vsub.f32 %v126, %v233
    %235 = vmatpush.msra.mxu0 %v234
    %v236 = vand.u32 %v125, 4294901760
    %v237 = vsub.f32 %v125, %v236
    %238 = vmatpush.msra.mxu0 %v237
    %v239 = vand.u32 %v135, 4294901760
    %v240 = vsub.f32 %v135, %v239
    %241 = vmatmul.f32.gmra.mxu0 %v240
    %v242 = vpop.f32.mrf.mxu0
    %v243 = vadd.f32 %v211, %v242
    %244 = vdwg.mxu0
    %245 = vmatpush.msra.mxu0 0.0
    %246 = vmatpush.msra.mxu0 0.0
    %247 = vmatpush.msra.mxu0 0.0
    %248 = vmatpush.msra.mxu0 0.0
    %249 = vmatpush.msra.mxu0 0.0
    %250 = vmatpush.msra.mxu0 0.0
    %251 = vmatpush.msra.mxu0 0.0
    %252 = vmatpush.msra.mxu0 0.0
    %253 = vmatpush.msra.mxu0 0.0
    %254 = vmatpush.msra.mxu0 0.0
    %255 = vmatpush.msra.mxu0 0.0
    %v256 = vand.u32 %v129, 4294901760
    %257 = vmatpush.msra.mxu0 %v256
    %v258 = vand.u32 %v128, 4294901760
    %259 = vmatpush.msra.mxu0 %v258
    %v260 = vand.u32 %v127, 4294901760
    %261 = vmatpush.msra.mxu0 %v260
    %v262 = vand.u32 %v126, 4294901760
    %263 = vmatpush.msra.mxu0 %v262
    %v264 = vand.u32 %v125, 4294901760
    %265 = vmatpush.msra.mxu0 %v264
    %v266 = vand.u32 %v135, 4294901760
    %v267 = vsub.f32 %v135, %v266
    %v268 = vand.u32 %v267, 4294901760
    %269 = vmatmul.f32.gmra.mxu0 %v268
    %v270 = vpop.f32.mrf.mxu0
    %v271 = vadd.f32 %v243, %v270
    %272 = vdwg.mxu0
    %273 = vmatpush.msra.mxu0 0.0
    %274 = vmatpush.msra.mxu0 0.0
    %275 = vmatpush.msra.mxu0 0.0
    %276 = vmatpush.msra.mxu0 0.0
    %277 = vmatpush.msra.mxu0 0.0
    %278 = vmatpush.msra.mxu0 0.0
    %279 = vmatpush.msra.mxu0 0.0
    %280 = vmatpush.msra.mxu0 0.0
    %281 = vmatpush.msra.mxu0 0.0
    %282 = vmatpush.msra.mxu0 0.0
    %283 = vmatpush.msra.mxu0 0.0
    %v284 = vand.u32 %v129, 4294901760
    %v285 = vsub.f32 %v129, %v284
    %v286 = vand.u32 %v285, 4294901760
    %287 = vmatpush.msra.mxu0 %v286
    %v288 = vand.u32 %v128, 4294901760
    %v289 = vsub.f32 %v128, %v288
    %v290 = vand.u32 %v289, 4294901760
    %291 = vmatpush.msra.mxu0 %v290
    %v292 = vand.u32 %v127, 4294901760
    %v293 = vsub.f32 %v127, %v292
    %v294 = vand.u32 %v293, 4294901760
    %295 = vmatpush.msra.mxu0 %v294
    %v296 = vand.u32 %v126, 4294901760
    %v297 = vsub.f32 %v126, %v296
    %v298 = vand.u32 %v297, 4294901760
    %299 = vmatpush.msra.mxu0 %v298
    %v300 = vand.u32 %v125, 4294901760
    %v301 = vsub.f32 %v125, %v300
    %v302 = vand.u32 %v301, 4294901760
    %303 = vmatpush.msra.mxu0 %v302
    %v304 = vand.u32 %v135, 4294901760
    %305 = vmatmul.f32.gmra.mxu0 %v304
    %v306 = vpop.f32.mrf.mxu0
    %v307 = vadd.f32 %v271, %v306
    %308 = vdwg.mxu0
    %309 = vmatpush.msra.mxu0 0.0
    %310 = vmatpush.msra.mxu0 0.0
    %311 = vmatpush.msra.mxu0 0.0
    %312 = vmatpush.msra.mxu0 0.0
    %313 = vmatpush.msra.mxu0 0.0
    %314 = vmatpush.msra.mxu0 0.0
    %315 = vmatpush.msra.mxu0 0.0
    %316 = vmatpush.msra.mxu0 0.0
    %317 = vmatpush.msra.mxu0 0.0
    %318 = vmatpush.msra.mxu0 0.0
    %319 = vmatpush.msra.mxu0 0.0
    %v320 = vand.u32 %v129, 4294901760
    %321 = vmatpush.msra.mxu0 %v320
    %v322 = vand.u32 %v128, 4294901760
    %323 = vmatpush.msra.mxu0 %v322
    %v324 = vand.u32 %v127, 4294901760
    %325 = vmatpush.msra.mxu0 %v324
    %v326 = vand.u32 %v126, 4294901760
    %327 = vmatpush.msra.mxu0 %v326
    %v328 = vand.u32 %v125, 4294901760
    %329 = vmatpush.msra.mxu0 %v328
    %v330 = vand.u32 %v135, 4294901760
    %331 = vmatmul.f32.gmra.mxu0 %v330
    %v332 = vpop.f32.mrf.mxu0
    %v333 = vadd.f32 %v307, %v332
    %334 = vdwg.mxu0
    %v335 = vtanh.pop %v333
    %v336 = vld [vmem:[#allocation6] sm:$0xff]
    %v337 = vld [vmem:[#allocation6 + $0x8] sm:$0xff]
    %v338 = vld [vmem:[#allocation6 + $0x10] sm:$0xff]
    %v339 = vld [vmem:[#allocation6 + $0x18] sm:$0xff]
    %v340 = vld [vmem:[#allocation6 + $0x20] sm:$0xff]
    %v342 = vsel %vm133, %v335, 0
    %344 = vmatpush.msra.mxu0 0.0
    %345 = vmatpush.msra.mxu0 0.0
    %346 = vmatpush.msra.mxu0 0.0
    %347 = vmatpush.msra.mxu0 0.0
    %348 = vmatpush.msra.mxu0 0.0
    %349 = vmatpush.msra.mxu0 0.0
    %350 = vmatpush.msra.mxu0 0.0
    %351 = vmatpush.msra.mxu0 0.0
    %352 = vmatpush.msra.mxu0 0.0
    %353 = vmatpush.msra.mxu0 0.0
    %354 = vmatpush.msra.mxu0 0.0
    %v355 = vand.u32 %v340, 4294901760
    %356 = vmatpush.msra.mxu0 %v355
    %v357 = vand.u32 %v339, 4294901760
    %358 = vmatpush.msra.mxu0 %v357
    %v359 = vand.u32 %v338, 4294901760
    %360 = vmatpush.msra.mxu0 %v359
    %v361 = vand.u32 %v337, 4294901760
    %362 = vmatpush.msra.mxu0 %v361
    %v363 = vand.u32 %v336, 4294901760
    %364 = vmatpush.msra.mxu0 %v363
    %v365 = vand.u32 %v342, 4294901760
    %v366 = vsub.f32 %v342, %v365
    %v367 = vand.u32 %v366, 4294901760
    %v368 = vsub.f32 %v366, %v367
    %v369 = vand.u32 %v368, 4294901760
    %370 = vmatmul.f32.gmra.mxu0 %v369
    %v371 = vpop.f32.mrf.mxu0
    %v372 = vadd.f32 0.0, %v371
    %373 = vdwg.mxu0
    %374 = vmatpush.msra.mxu0 0.0
    %375 = vmatpush.msra.mxu0 0.0
    %376 = vmatpush.msra.mxu0 0.0
    %377 = vmatpush.msra.mxu0 0.0
    %378 = vmatpush.msra.mxu0 0.0
    %379 = vmatpush.msra.mxu0 0.0
    %380 = vmatpush.msra.mxu0 0.0
    %381 = vmatpush.msra.mxu0 0.0
    %382 = vmatpush.msra.mxu0 0.0
    %383 = vmatpush.msra.mxu0 0.0
    %384 = vmatpush.msra.mxu0 0.0
    %v385 = vand.u32 %v340, 4294901760
    %v386 = vsub.f32 %v340, %v385
    %v387 = vand.u32 %v386, 4294901760
    %v388 = vsub.f32 %v386, %v387
    %v389 = vand.u32 %v388, 4294901760
    %390 = vmatpush.msra.mxu0 %v389
    %v391 = vand.u32 %v339, 4294901760
    %v392 = vsub.f32 %v339, %v391
    %v393 = vand.u32 %v392, 4294901760
    %v394 = vsub.f32 %v392, %v393
    %v395 = vand.u32 %v394, 4294901760
    %396 = vmatpush.msra.mxu0 %v395
    %v397 = vand.u32 %v338, 4294901760
    %v398 = vsub.f32 %v338, %v397
    %v399 = vand.u32 %v398, 4294901760
    %v400 = vsub.f32 %v398, %v399
    %v401 = vand.u32 %v400, 4294901760
    %402 = vmatpush.msra.mxu0 %v401
    %v403 = vand.u32 %v337, 4294901760
    %v404 = vsub.f32 %v337, %v403
    %v405 = vand.u32 %v404, 4294901760
    %v406 = vsub.f32 %v404, %v405
    %v407 = vand.u32 %v406, 4294901760
    %408 = vmatpush.msra.mxu0 %v407
    %v409 = vand.u32 %v336, 4294901760
    %v410 = vsub.f32 %v336, %v409
    %v411 = vand.u32 %v410, 4294901760
    %v412 = vsub.f32 %v410, %v411
    %v413 = vand.u32 %v412, 4294901760
    %414 = vmatpush.msra.mxu0 %v413
    %v415 = vand.u32 %v342, 4294901760
    %416 = vmatmul.f32.gmra.mxu0 %v415
    %v417 = vpop.f32.mrf.mxu0
    %v418 = vadd.f32 %v372, %v417
    %419 = vdwg.mxu0
    %420 = vmatpush.msra.mxu0 0.0
    %421 = vmatpush.msra.mxu0 0.0
    %422 = vmatpush.msra.mxu0 0.0
    %423 = vmatpush.msra.mxu0 0.0
    %424 = vmatpush.msra.mxu0 0.0
    %425 = vmatpush.msra.mxu0 0.0
    %426 = vmatpush.msra.mxu0 0.0
    %427 = vmatpush.msra.mxu0 0.0
    %428 = vmatpush.msra.mxu0 0.0
    %429 = vmatpush.msra.mxu0 0.0
    %430 = vmatpush.msra.mxu0 0.0
    %v431 = vand.u32 %v340, 4294901760
    %v432 = vsub.f32 %v340, %v431
    %433 = vmatpush.msra.mxu0 %v432
    %v434 = vand.u32 %v339, 4294901760
    %v435 = vsub.f32 %v339, %v434
    %436 = vmatpush.msra.mxu0 %v435
    %v437 = vand.u32 %v338, 4294901760
    %v438 = vsub.f32 %v338, %v437
    %439 = vmatpush.msra.mxu0 %v438
    %v440 = vand.u32 %v337, 4294901760
    %v441 = vsub.f32 %v337, %v440
    %442 = vmatpush.msra.mxu0 %v441
    %v443 = vand.u32 %v336, 4294901760
    %v444 = vsub.f32 %v336, %v443
    %445 = vmatpush.msra.mxu0 %v444
    %v446 = vand.u32 %v342, 4294901760
    %v447 = vsub.f32 %v342, %v446
    %448 = vmatmul.f32.gmra.mxu0 %v447
    %v449 = vpop.f32.mrf.mxu0
    %v450 = vadd.f32 %v418, %v449
    %451 = vdwg.mxu0
    %452 = vmatpush.msra.mxu0 0.0
    %453 = vmatpush.msra.mxu0 0.0
    %454 = vmatpush.msra.mxu0 0.0
    %455 = vmatpush.msra.mxu0 0.0
    %456 = vmatpush.msra.mxu0 0.0
    %457 = vmatpush.msra.mxu0 0.0
    %458 = vmatpush.msra.mxu0 0.0
    %459 = vmatpush.msra.mxu0 0.0
    %460 = vmatpush.msra.mxu0 0.0
    %461 = vmatpush.msra.mxu0 0.0
    %462 = vmatpush.msra.mxu0 0.0
    %v463 = vand.u32 %v340, 4294901760
    %464 = vmatpush.msra.mxu0 %v463
    %v465 = vand.u32 %v339, 4294901760
    %466 = vmatpush.msra.mxu0 %v465
    %v467 = vand.u32 %v338, 4294901760
    %468 = vmatpush.msra.mxu0 %v467
    %v469 = vand.u32 %v337, 4294901760
    %470 = vmatpush.msra.mxu0 %v469
    %v471 = vand.u32 %v336, 4294901760
    %472 = vmatpush.msra.mxu0 %v471
    %v473 = vand.u32 %v342, 4294901760
    %v474 = vsub.f32 %v342, %v473
    %v475 = vand.u32 %v474, 4294901760
    %476 = vmatmul.f32.gmra.mxu0 %v475
    %v477 = vpop.f32.mrf.mxu0
    %v478 = vadd.f32 %v450, %v477
    %479 = vdwg.mxu0
    %480 = vmatpush.msra.mxu0 0.0
    %481 = vmatpush.msra.mxu0 0.0
    %482 = vmatpush.msra.mxu0 0.0
    %483 = vmatpush.msra.mxu0 0.0
    %484 = vmatpush.msra.mxu0 0.0
    %485 = vmatpush.msra.mxu0 0.0
    %486 = vmatpush.msra.mxu0 0.0
    %487 = vmatpush.msra.mxu0 0.0
    %488 = vmatpush.msra.mxu0 0.0
    %489 = vmatpush.msra.mxu0 0.0
    %490 = vmatpush.msra.mxu0 0.0
    %v491 = vand.u32 %v340, 4294901760
    %v492 = vsub.f32 %v340, %v491
    %v493 = vand.u32 %v492, 4294901760
    %494 = vmatpush.msra.mxu0 %v493
    %v495 = vand.u32 %v339, 4294901760
    %v496 = vsub.f32 %v339, %v495
    %v497 = vand.u32 %v496, 4294901760
    %498 = vmatpush.msra.mxu0 %v497
    %v499 = vand.u32 %v338, 4294901760
    %v500 = vsub.f32 %v338, %v499
    %v501 = vand.u32 %v500, 4294901760
    %502 = vmatpush.msra.mxu0 %v501
    %v503 = vand.u32 %v337, 4294901760
    %v504 = vsub.f32 %v337, %v503
    %v505 = vand.u32 %v504, 4294901760
    %506 = vmatpush.msra.mxu0 %v505
    %v507 = vand.u32 %v336, 4294901760
    %v508 = vsub.f32 %v336, %v507
    %v509 = vand.u32 %v508, 4294901760
    %510 = vmatpush.msra.mxu0 %v509
    %v511 = vand.u32 %v342, 4294901760
    %512 = vmatmul.f32.gmra.mxu0 %v511
    %v513 = vpop.f32.mrf.mxu0
    %v514 = vadd.f32 %v478, %v513
    %515 = vdwg.mxu0
    %516 = vmatpush.msra.mxu0 0.0
    %517 = vmatpush.msra.mxu0 0.0
    %518 = vmatpush.msra.mxu0 0.0
    %519 = vmatpush.msra.mxu0 0.0
    %520 = vmatpush.msra.mxu0 0.0
    %521 = vmatpush.msra.mxu0 0.0
    %522 = vmatpush.msra.mxu0 0.0
    %523 = vmatpush.msra.mxu0 0.0
    %524 = vmatpush.msra.mxu0 0.0
    %525 = vmatpush.msra.mxu0 0.0
    %526 = vmatpush.msra.mxu0 0.0
    %v527 = vand.u32 %v340, 4294901760
    %528 = vmatpush.msra.mxu0 %v527
    %v529 = vand.u32 %v339, 4294901760
    %530 = vmatpush.msra.mxu0 %v529
    %v531 = vand.u32 %v338, 4294901760
    %532 = vmatpush.msra.mxu0 %v531
    %v533 = vand.u32 %v337, 4294901760
    %534 = vmatpush.msra.mxu0 %v533
    %v535 = vand.u32 %v336, 4294901760
    %536 = vmatpush.msra.mxu0 %v535
    %v537 = vand.u32 %v342, 4294901760
    %538 = vmatmul.f32.gmra.mxu0 %v537
    %v539 = vpop.f32.mrf.mxu0
    %v540 = vadd.f32 %v514, %v539
    %541 = vdwg.mxu0
    %v542 = vtanh.pop %v540
    %v543 = vadd.f32 %v335, %v542
    %v544 = vld [vmem:[#allocation8] sm:$0xff]
    %v545 = vld [vmem:[#allocation8 + $0x8] sm:$0xff]
    %v546 = vld [vmem:[#allocation8 + $0x10] sm:$0xff]
    %v547 = vld [vmem:[#allocation8 + $0x18] sm:$0xff]
    %v548 = vld [vmem:[#allocation8 + $0x20] sm:$0xff]
    %549 = vmatpush.msra.mxu0 0.0
    %550 = vmatpush.msra.mxu0 0.0
    %551 = vmatpush.msra.mxu0 0.0
    %552 = vmatpush.msra.mxu0 0.0
    %553 = vmatpush.msra.mxu0 0.0
    %554 = vmatpush.msra.mxu0 0.0
    %555 = vmatpush.msra.mxu0 0.0
    %556 = vmatpush.msra.mxu0 0.0
    %557 = vmatpush.msra.mxu0 0.0
    %558 = vmatpush.msra.mxu0 0.0
    %559 = vmatpush.msra.mxu0 0.0
    %v560 = vand.u32 %v548, 4294901760
    %561 = vmatpush.msra.mxu0 %v560
    %v562 = vand.u32 %v547, 4294901760
    %563 = vmatpush.msra.mxu0 %v562
    %v564 = vand.u32 %v546, 4294901760
    %565 = vmatpush.msra.mxu0 %v564
    %v566 = vand.u32 %v545, 4294901760
    %567 = vmatpush.msra.mxu0 %v566
    %v568 = vand.u32 %v544, 4294901760
    %569 = vmatpush.msra.mxu0 %v568
    %v570 = vand.u32 %v342, 4294901760
    %v571 = vsub.f32 %v342, %v570
    %v572 = vand.u32 %v571, 4294901760
    %v573 = vsub.f32 %v571, %v572
    %v574 = vand.u32 %v573, 4294901760
    %575 = vmatmul.f32.gmra.mxu0 %v574
    %v576 = vpop.f32.mrf.mxu0
    %v577 = vadd.f32 0.0, %v576
    %578 = vdwg.mxu0
    %579 = vmatpush.msra.mxu0 0.0
    %580 = vmatpush.msra.mxu0 0.0
    %581 = vmatpush.msra.mxu0 0.0
    %582 = vmatpush.msra.mxu0 0.0
    %583 = vmatpush.msra.mxu0 0.0
    %584 = vmatpush.msra.mxu0 0.0
    %585 = vmatpush.msra.mxu0 0.0
    %586 = vmatpush.msra.mxu0 0.0
    %587 = vmatpush.msra.mxu0 0.0
    %588 = vmatpush.msra.mxu0 0.0
    %589 = vmatpush.msra.mxu0 0.0
    %v590 = vand.u32 %v548, 4294901760
    %v591 = vsub.f32 %v548, %v590
    %v592 = vand.u32 %v591, 4294901760
    %v593 = vsub.f32 %v591, %v592
    %v594 = vand.u32 %v593, 4294901760
    %595 = vmatpush.msra.mxu0 %v594
    %v596 = vand.u32 %v547, 4294901760
    %v597 = vsub.f32 %v547, %v596
    %v598 = vand.u32 %v597, 4294901760
    %v599 = vsub.f32 %v597, %v598
    %v600 = vand.u32 %v599, 4294901760
    %601 = vmatpush.msra.mxu0 %v600
    %v602 = vand.u32 %v546, 4294901760
    %v603 = vsub.f32 %v546, %v602
    %v604 = vand.u32 %v603, 4294901760
    %v605 = vsub.f32 %v603, %v604
    %v606 = vand.u32 %v605, 4294901760
    %607 = vmatpush.msra.mxu0 %v606
    %v608 = vand.u32 %v545, 4294901760
    %v609 = vsub.f32 %v545, %v608
    %v610 = vand.u32 %v609, 4294901760
    %v611 = vsub.f32 %v609, %v610
    %v612 = vand.u32 %v611, 4294901760
    %613 = vmatpush.msra.mxu0 %v612
    %v614 = vand.u32 %v544, 4294901760
    %v615 = vsub.f32 %v544, %v614
    %v616 = vand.u32 %v615, 4294901760
    %v617 = vsub.f32 %v615, %v616
    %v618 = vand.u32 %v617, 4294901760
    %619 = vmatpush.msra.mxu0 %v618
    %v620 = vand.u32 %v342, 4294901760
    %621 = vmatmul.f32.gmra.mxu0 %v620
    %v622 = vpop.f32.mrf.mxu0
    %v623 = vadd.f32 %v577, %v622
    %624 = vdwg.mxu0
    %625 = vmatpush.msra.mxu0 0.0
    %626 = vmatpush.msra.mxu0 0.0
    %627 = vmatpush.msra.mxu0 0.0
    %628 = vmatpush.msra.mxu0 0.0
    %629 = vmatpush.msra.mxu0 0.0
    %630 = vmatpush.msra.mxu0 0.0
    %631 = vmatpush.msra.mxu0 0.0
    %632 = vmatpush.msra.mxu0 0.0
    %633 = vmatpush.msra.mxu0 0.0
    %634 = vmatpush.msra.mxu0 0.0
    %635 = vmatpush.msra.mxu0 0.0
    %v636 = vand.u32 %v548, 4294901760
    %v637 = vsub.f32 %v548, %v636
    %638 = vmatpush.msra.mxu0 %v637
    %v639 = vand.u32 %v547, 4294901760
    %v640 = vsub.f32 %v547, %v639
    %641 = vmatpush.msra.mxu0 %v640
    %v642 = vand.u32 %v546, 4294901760
    %v643 = vsub.f32 %v546, %v642
    %644 = vmatpush.msra.mxu0 %v643
    %v645 = vand.u32 %v545, 4294901760
    %v646 = vsub.f32 %v545, %v645
    %647 = vmatpush.msra.mxu0 %v646
    %v648 = vand.u32 %v544, 4294901760
    %v649 = vsub.f32 %v544, %v648
    %650 = vmatpush.msra.mxu0 %v649
    %v651 = vand.u32 %v342, 4294901760
    %v652 = vsub.f32 %v342, %v651
    %653 = vmatmul.f32.gmra.mxu0 %v652
    %v654 = vpop.f32.mrf.mxu0
    %v655 = vadd.f32 %v623, %v654
    %656 = vdwg.mxu0
    %657 = vmatpush.msra.mxu0 0.0
    %658 = vmatpush.msra.mxu0 0.0
    %659 = vmatpush.msra.mxu0 0.0
    %660 = vmatpush.msra.mxu0 0.0
    %661 = vmatpush.msra.mxu0 0.0
    %662 = vmatpush.msra.mxu0 0.0
    %663 = vmatpush.msra.mxu0 0.0
    %664 = vmatpush.msra.mxu0 0.0
    %665 = vmatpush.msra.mxu0 0.0
    %666 = vmatpush.msra.mxu0 0.0
    %667 = vmatpush.msra.mxu0 0.0
    %v668 = vand.u32 %v548, 4294901760
    %669 = vmatpush.msra.mxu0 %v668
    %v670 = vand.u32 %v547, 4294901760
    %671 = vmatpush.msra.mxu0 %v670
    %v672 = vand.u32 %v546, 4294901760
    %673 = vmatpush.msra.mxu0 %v672
    %v674 = vand.u32 %v545, 4294901760
    %675 = vmatpush.msra.mxu0 %v674
    %v676 = vand.u32 %v544, 4294901760
    %677 = vmatpush.msra.mxu0 %v676
    %v678 = vand.u32 %v342, 4294901760
    %v679 = vsub.f32 %v342, %v678
    %v680 = vand.u32 %v679, 4294901760
    %681 = vmatmul.f32.gmra.mxu0 %v680
    %v682 = vpop.f32.mrf.mxu0
    %v683 = vadd.f32 %v655, %v682
    %684 = vdwg.mxu0
    %685 = vmatpush.msra.mxu0 0.0
    %686 = vmatpush.msra.mxu0 0.0
    %687 = vmatpush.msra.mxu0 0.0
    %688 = vmatpush.msra.mxu0 0.0
    %689 = vmatpush.msra.mxu0 0.0
    %690 = vmatpush.msra.mxu0 0.0
    %691 = vmatpush.msra.mxu0 0.0
    %692 = vmatpush.msra.mxu0 0.0
    %693 = vmatpush.msra.mxu0 0.0
    %694 = vmatpush.msra.mxu0 0.0
    %695 = vmatpush.msra.mxu0 0.0
    %v696 = vand.u32 %v548, 4294901760
    %v697 = vsub.f32 %v548, %v696
    %v698 = vand.u32 %v697, 4294901760
    %699 = vmatpush.msra.mxu0 %v698
    %v700 = vand.u32 %v547, 4294901760
    %v701 = vsub.f32 %v547, %v700
    %v702 = vand.u32 %v701, 4294901760
    %703 = vmatpush.msra.mxu0 %v702
    %v704 = vand.u32 %v546, 4294901760
    %v705 = vsub.f32 %v546, %v704
    %v706 = vand.u32 %v705, 4294901760
    %707 = vmatpush.msra.mxu0 %v706
    %v708 = vand.u32 %v545, 4294901760
    %v709 = vsub.f32 %v545, %v708
    %v710 = vand.u32 %v709, 4294901760
    %711 = vmatpush.msra.mxu0 %v710
    %v712 = vand.u32 %v544, 4294901760
    %v713 = vsub.f32 %v544, %v712
    %v714 = vand.u32 %v713, 4294901760
    %715 = vmatpush.msra.mxu0 %v714
    %v716 = vand.u32 %v342, 4294901760
    %717 = vmatmul.f32.gmra.mxu0 %v716
    %v718 = vpop.f32.mrf.mxu0
    %v719 = vadd.f32 %v683, %v718
    %720 = vdwg.mxu0
    %721 = vmatpush.msra.mxu0 0.0
    %722 = vmatpush.msra.mxu0 0.0
    %723 = vmatpush.msra.mxu0 0.0
    %724 = vmatpush.msra.mxu0 0.0
    %725 = vmatpush.msra.mxu0 0.0
    %726 = vmatpush.msra.mxu0 0.0
    %727 = vmatpush.msra.mxu0 0.0
    %728 = vmatpush.msra.mxu0 0.0
    %729 = vmatpush.msra.mxu0 0.0
    %730 = vmatpush.msra.mxu0 0.0
    %731 = vmatpush.msra.mxu0 0.0
    %v732 = vand.u32 %v548, 4294901760
    %733 = vmatpush.msra.mxu0 %v732
    %v734 = vand.u32 %v547, 4294901760
    %735 = vmatpush.msra.mxu0 %v734
    %v736 = vand.u32 %v546, 4294901760
    %737 = vmatpush.msra.mxu0 %v736
    %v738 = vand.u32 %v545, 4294901760
    %739 = vmatpush.msra.mxu0 %v738
    %v740 = vand.u32 %v544, 4294901760
    %741 = vmatpush.msra.mxu0 %v740
    %v742 = vand.u32 %v342, 4294901760
    %743 = vmatmul.f32.gmra.mxu0 %v742
    %v744 = vpop.f32.mrf.mxu0
    %v745 = vadd.f32 %v719, %v744
    %746 = vdwg.mxu0
    %v747 = vtanh.pop %v745
    %v748 = vadd.f32 %v543, %v747
    %v749 = vmul.f32 %v122, 0.9
    %v750 = vmul.f32 %v748, 0.1
    %v751 = vadd.f32 %v749, %v750
    %v752 = vld [vmem:[%s8] sm:$0x1]
    %v753 = vmul.f32 %v752, %v751
    %v754 = vld [vmem:[%s9] sm:$0x1]
    %v755 = vtanh.pop %v751
    %v756 = vmul.f32 %v754, %v755
    %v757 = vsub.f32 %v753, %v756
    %v758 = vld [vmem:[#allocation9] sm:$0xff]
    %v759 = vld [vmem:[#allocation9 + $0x8] sm:$0xff]
    %v760 = vld [vmem:[#allocation9 + $0x10] sm:$0xff]
    %v761 = vld [vmem:[#allocation9 + $0x18] sm:$0xff]
    %v762 = vld [vmem:[#allocation9 + $0x20] sm:$0xff]
    %v763 = vld [vmem:[%s11] sm:$0xff]
    %v764 = vld [vmem:[%s11 + $0x8] sm:$0xff]
    %v765 = vld [vmem:[%s11 + $0x10] sm:$0xff]
    %v766 = vld [vmem:[%s11 + $0x18] sm:$0xff]
    %vm767 = vcmask 261120
    %v769 = vsel %vm767, %v123, 0
    %771 = vmatpush.msra.mxu0 0.0
    %772 = vmatpush.msra.mxu0 0.0
    %773 = vmatpush.msra.mxu0 0.0
    %774 = vmatpush.msra.mxu0 0.0
    %775 = vmatpush.msra.mxu0 0.0
    %776 = vmatpush.msra.mxu0 0.0
    %777 = vmatpush.msra.mxu0 0.0
    %778 = vmatpush.msra.mxu0 0.0
    %779 = vmatpush.msra.mxu0 0.0
    %780 = vmatpush.msra.mxu0 0.0
    %781 = vmatpush.msra.mxu0 0.0
    %782 = vmatpush.msra.mxu0 0.0
    %v783 = vand.u32 %v766, 4294901760
    %784 = vmatpush.msra.mxu0 %v783
    %v785 = vand.u32 %v765, 4294901760
    %786 = vmatpush.msra.mxu0 %v785
    %v787 = vand.u32 %v764, 4294901760
    %788 = vmatpush.msra.mxu0 %v787
    %v789 = vand.u32 %v763, 4294901760
    %790 = vmatpush.msra.mxu0 %v789
    %v791 = vand.u32 %v769, 4294901760
    %v792 = vsub.f32 %v769, %v791
    %v793 = vand.u32 %v792, 4294901760
    %v794 = vsub.f32 %v792, %v793
    %v795 = vand.u32 %v794, 4294901760
    %796 = vmatmul.f32.gmra.mxu0 %v795
    %v797 = vpop.f32.mrf.mxu0
    %v798 = vadd.f32 0.0, %v797
    %799 = vdwg.mxu0
    %800 = vmatpush.msra.mxu0 0.0
    %801 = vmatpush.msra.mxu0 0.0
    %802 = vmatpush.msra.mxu0 0.0
    %803 = vmatpush.msra.mxu0 0.0
    %804 = vmatpush.msra.mxu0 0.0
    %805 = vmatpush.msra.mxu0 0.0
    %806 = vmatpush.msra.mxu0 0.0
    %807 = vmatpush.msra.mxu0 0.0
    %808 = vmatpush.msra.mxu0 0.0
    %809 = vmatpush.msra.mxu0 0.0
    %810 = vmatpush.msra.mxu0 0.0
    %811 = vmatpush.msra.mxu0 0.0
    %v812 = vand.u32 %v766, 4294901760
    %v813 = vsub.f32 %v766, %v812
    %v814 = vand.u32 %v813, 4294901760
    %v815 = vsub.f32 %v813, %v814
    %v816 = vand.u32 %v815, 4294901760
    %817 = vmatpush.msra.mxu0 %v816
    %v818 = vand.u32 %v765, 4294901760
    %v819 = vsub.f32 %v765, %v818
    %v820 = vand.u32 %v819, 4294901760
    %v821 = vsub.f32 %v819, %v820
    %v822 = vand.u32 %v821, 4294901760
    %823 = vmatpush.msra.mxu0 %v822
    %v824 = vand.u32 %v764, 4294901760
    %v825 = vsub.f32 %v764, %v824
    %v826 = vand.u32 %v825, 4294901760
    %v827 = vsub.f32 %v825, %v826
    %v828 = vand.u32 %v827, 4294901760
    %829 = vmatpush.msra.mxu0 %v828
    %v830 = vand.u32 %v763, 4294901760
    %v831 = vsub.f32 %v763, %v830
    %v832 = vand.u32 %v831, 4294901760
    %v833 = vsub.f32 %v831, %v832
    %v834 = vand.u32 %v833, 4294901760
    %835 = vmatpush.msra.mxu0 %v834
    %v836 = vand.u32 %v769, 4294901760
    %837 = vmatmul.f32.gmra.mxu0 %v836
    %v838 = vpop.f32.mrf.mxu0
    %v839 = vadd.f32 %v798, %v838
    %840 = vdwg.mxu0
    %841 = vmatpush.msra.mxu0 0.0
    %842 = vmatpush.msra.mxu0 0.0
    %843 = vmatpush.msra.mxu0 0.0
    %844 = vmatpush.msra.mxu0 0.0
    %845 = vmatpush.msra.mxu0 0.0
    %846 = vmatpush.msra.mxu0 0.0
    %847 = vmatpush.msra.mxu0 0.0
    %848 = vmatpush.msra.mxu0 0.0
    %849 = vmatpush.msra.mxu0 0.0
    %850 = vmatpush.msra.mxu0 0.0
    %851 = vmatpush.msra.mxu0 0.0
    %852 = vmatpush.msra.mxu0 0.0
    %v853 = vand.u32 %v766, 4294901760
    %v854 = vsub.f32 %v766, %v853
    %855 = vmatpush.msra.mxu0 %v854
    %v856 = vand.u32 %v765, 4294901760
    %v857 = vsub.f32 %v765, %v856
    %858 = vmatpush.msra.mxu0 %v857
    %v859 = vand.u32 %v764, 4294901760
    %v860 = vsub.f32 %v764, %v859
    %861 = vmatpush.msra.mxu0 %v860
    %v862 = vand.u32 %v763, 4294901760
    %v863 = vsub.f32 %v763, %v862
    %864 = vmatpush.msra.mxu0 %v863
    %v865 = vand.u32 %v769, 4294901760
    %v866 = vsub.f32 %v769, %v865
    %867 = vmatmul.f32.gmra.mxu0 %v866
    %v868 = vpop.f32.mrf.mxu0
    %v869 = vadd.f32 %v839, %v868
    %870 = vdwg.mxu0
    %871 = vmatpush.msra.mxu0 0.0
    %872 = vmatpush.msra.mxu0 0.0
    %873 = vmatpush.msra.mxu0 0.0
    %874 = vmatpush.msra.mxu0 0.0
    %875 = vmatpush.msra.mxu0 0.0
    %876 = vmatpush.msra.mxu0 0.0
    %877 = vmatpush.msra.mxu0 0.0
    %878 = vmatpush.msra.mxu0 0.0
    %879 = vmatpush.msra.mxu0 0.0
    %880 = vmatpush.msra.mxu0 0.0
    %881 = vmatpush.msra.mxu0 0.0
    %882 = vmatpush.msra.mxu0 0.0
    %v883 = vand.u32 %v766, 4294901760
    %884 = vmatpush.msra.mxu0 %v883
    %v885 = vand.u32 %v765, 4294901760
    %886 = vmatpush.msra.mxu0 %v885
    %v887 = vand.u32 %v764, 4294901760
    %888 = vmatpush.msra.mxu0 %v887
    %v889 = vand.u32 %v763, 4294901760
    %890 = vmatpush.msra.mxu0 %v889
    %v891 = vand.u32 %v769, 4294901760
    %v892 = vsub.f32 %v769, %v891
    %v893 = vand.u32 %v892, 4294901760
    %894 = vmatmul.f32.gmra.mxu0 %v893
    %v895 = vpop.f32.mrf.mxu0
    %v896 = vadd.f32 %v869, %v895
    %897 = vdwg.mxu0
    %898 = vmatpush.msra.mxu0 0.0
    %899 = vmatpush.msra.mxu0 0.0
    %900 = vmatpush.msra.mxu0 0.0
    %901 = vmatpush.msra.mxu0 0.0
    %902 = vmatpush.msra.mxu0 0.0
    %903 = vmatpush.msra.mxu0 0.0
    %904 = vmatpush.msra.mxu0 0.0
    %905 = vmatpush.msra.mxu0 0.0
    %906 = vmatpush.msra.mxu0 0.0
    %907 = vmatpush.msra.mxu0 0.0
    %908 = vmatpush.msra.mxu0 0.0
    %909 = vmatpush.msra.mxu0 0.0
    %v910 = vand.u32 %v766, 4294901760
    %v911 = vsub.f32 %v766, %v910
    %v912 = vand.u32 %v911, 4294901760
    %913 = vmatpush.msra.mxu0 %v912
    %v914 = vand.u32 %v765, 4294901760
    %v915 = vsub.f32 %v765, %v914
    %v916 = vand.u32 %v915, 4294901760
    %917 = vmatpush.msra.mxu0 %v916
    %v918 = vand.u32 %v764, 4294901760
    %v919 = vsub.f32 %v764, %v918
    %v920 = vand.u32 %v919, 4294901760
    %921 = vmatpush.msra.mxu0 %v920
    %v922 = vand.u32 %v763, 4294901760
    %v923 = vsub.f32 %v763, %v922
    %v924 = vand.u32 %v923, 4294901760
    %925 = vmatpush.msra.mxu0 %v924
    %v926 = vand.u32 %v769, 4294901760
    %927 = vmatmul.f32.gmra.mxu0 %v926
    %v928 = vpop.f32.mrf.mxu0
    %v929 = vadd.f32 %v896, %v928
    %930 = vdwg.mxu0
    %931 = vmatpush.msra.mxu0 0.0
    %932 = vmatpush.msra.mxu0 0.0
    %933 = vmatpush.msra.mxu0 0.0
    %934 = vmatpush.msra.mxu0 0.0
    %935 = vmatpush.msra.mxu0 0.0
    %936 = vmatpush.msra.mxu0 0.0
    %937 = vmatpush.msra.mxu0 0.0
    %938 = vmatpush.msra.mxu0 0.0
    %939 = vmatpush.msra.mxu0 0.0
    %940 = vmatpush.msra.mxu0 0.0
    %941 = vmatpush.msra.mxu0 0.0
    %942 = vmatpush.msra.mxu0 0.0
    %v943 = vand.u32 %v766, 4294901760
    %944 = vmatpush.msra.mxu0 %v943
    %v945 = vand.u32 %v765, 4294901760
    %946 = vmatpush.msra.mxu0 %v945
    %v947 = vand.u32 %v764, 4294901760
    %948 = vmatpush.msra.mxu0 %v947
    %v949 = vand.u32 %v763, 4294901760
    %950 = vmatpush.msra.mxu0 %v949
    %v951 = vand.u32 %v769, 4294901760
    %952 = vmatmul.f32.gmra.mxu0 %v951
    %v953 = vpop.f32.mrf.mxu0
    %v954 = vadd.f32 %v929, %v953
    %955 = vdwg.mxu0
    %v957 = vsel %vm133, %v757, 0
    %959 = vmatpush.msra.mxu0 0.0
    %960 = vmatpush.msra.mxu0 0.0
    %961 = vmatpush.msra.mxu0 0.0
    %962 = vmatpush.msra.mxu0 0.0
    %963 = vmatpush.msra.mxu0 0.0
    %964 = vmatpush.msra.mxu0 0.0
    %965 = vmatpush.msra.mxu0 0.0
    %966 = vmatpush.msra.mxu0 0.0
    %967 = vmatpush.msra.mxu0 0.0
    %968 = vmatpush.msra.mxu0 0.0
    %969 = vmatpush.msra.mxu0 0.0
    %v970 = vand.u32 %v762, 4294901760
    %971 = vmatpush.msra.mxu0 %v970
    %v972 = vand.u32 %v761, 4294901760
    %973 = vmatpush.msra.mxu0 %v972
    %v974 = vand.u32 %v760, 4294901760
    %975 = vmatpush.msra.mxu0 %v974
    %v976 = vand.u32 %v759, 4294901760
    %977 = vmatpush.msra.mxu0 %v976
    %v978 = vand.u32 %v758, 4294901760
    %979 = vmatpush.msra.mxu0 %v978
    %v980 = vand.u32 %v957, 4294901760
    %v981 = vsub.f32 %v957, %v980
    %v982 = vand.u32 %v981, 4294901760
    %v983 = vsub.f32 %v981, %v982
    %v984 = vand.u32 %v983, 4294901760
    %985 = vmatmul.f32.gmra.mxu0 %v984
    %v986 = vpop.f32.mrf.mxu0
    %v987 = vadd.f32 %v954, %v986
    %988 = vdwg.mxu0
    %989 = vmatpush.msra.mxu0 0.0
    %990 = vmatpush.msra.mxu0 0.0
    %991 = vmatpush.msra.mxu0 0.0
    %992 = vmatpush.msra.mxu0 0.0
    %993 = vmatpush.msra.mxu0 0.0
    %994 = vmatpush.msra.mxu0 0.0
    %995 = vmatpush.msra.mxu0 0.0
    %996 = vmatpush.msra.mxu0 0.0
    %997 = vmatpush.msra.mxu0 0.0
    %998 = vmatpush.msra.mxu0 0.0
    %999 = vmatpush.msra.mxu0 0.0
    %v1000 = vand.u32 %v762, 4294901760
    %v1001 = vsub.f32 %v762, %v1000
    %v1002 = vand.u32 %v1001, 4294901760
    %v1003 = vsub.f32 %v1001, %v1002
    %v1004 = vand.u32 %v1003, 4294901760
    %1005 = vmatpush.msra.mxu0 %v1004
    %v1006 = vand.u32 %v761, 4294901760
    %v1007 = vsub.f32 %v761, %v1006
    %v1008 = vand.u32 %v1007, 4294901760
    %v1009 = vsub.f32 %v1007, %v1008
    %v1010 = vand.u32 %v1009, 4294901760
    %1011 = vmatpush.msra.mxu0 %v1010
    %v1012 = vand.u32 %v760, 4294901760
    %v1013 = vsub.f32 %v760, %v1012
    %v1014 = vand.u32 %v1013, 4294901760
    %v1015 = vsub.f32 %v1013, %v1014
    %v1016 = vand.u32 %v1015, 4294901760
    %1017 = vmatpush.msra.mxu0 %v1016
    %v1018 = vand.u32 %v759, 4294901760
    %v1019 = vsub.f32 %v759, %v1018
    %v1020 = vand.u32 %v1019, 4294901760
    %v1021 = vsub.f32 %v1019, %v1020
    %v1022 = vand.u32 %v1021, 4294901760
    %1023 = vmatpush.msra.mxu0 %v1022
    %v1024 = vand.u32 %v758, 4294901760
    %v1025 = vsub.f32 %v758, %v1024
    %v1026 = vand.u32 %v1025, 4294901760
    %v1027 = vsub.f32 %v1025, %v1026
    %v1028 = vand.u32 %v1027, 4294901760
    %1029 = vmatpush.msra.mxu0 %v1028
    %v1030 = vand.u32 %v957, 4294901760
    %1031 = vmatmul.f32.gmra.mxu0 %v1030
    %v1032 = vpop.f32.mrf.mxu0
    %v1033 = vadd.f32 %v987, %v1032
    %1034 = vdwg.mxu0
    %1035 = vmatpush.msra.mxu0 0.0
    %1036 = vmatpush.msra.mxu0 0.0
    %1037 = vmatpush.msra.mxu0 0.0
    %1038 = vmatpush.msra.mxu0 0.0
    %1039 = vmatpush.msra.mxu0 0.0
    %1040 = vmatpush.msra.mxu0 0.0
    %1041 = vmatpush.msra.mxu0 0.0
    %1042 = vmatpush.msra.mxu0 0.0
    %1043 = vmatpush.msra.mxu0 0.0
    %1044 = vmatpush.msra.mxu0 0.0
    %1045 = vmatpush.msra.mxu0 0.0
    %v1046 = vand.u32 %v762, 4294901760
    %v1047 = vsub.f32 %v762, %v1046
    %1048 = vmatpush.msra.mxu0 %v1047
    %v1049 = vand.u32 %v761, 4294901760
    %v1050 = vsub.f32 %v761, %v1049
    %1051 = vmatpush.msra.mxu0 %v1050
    %v1052 = vand.u32 %v760, 4294901760
    %v1053 = vsub.f32 %v760, %v1052
    %1054 = vmatpush.msra.mxu0 %v1053
    %v1055 = vand.u32 %v759, 4294901760
    %v1056 = vsub.f32 %v759, %v1055
    %1057 = vmatpush.msra.mxu0 %v1056
    %v1058 = vand.u32 %v758, 4294901760
    %v1059 = vsub.f32 %v758, %v1058
    %1060 = vmatpush.msra.mxu0 %v1059
    %v1061 = vand.u32 %v957, 4294901760
    %v1062 = vsub.f32 %v957, %v1061
    %1063 = vmatmul.f32.gmra.mxu0 %v1062
    %v1064 = vpop.f32.mrf.mxu0
    %v1065 = vadd.f32 %v1033, %v1064
    %1066 = vdwg.mxu0
    %1067 = vmatpush.msra.mxu0 0.0
    %1068 = vmatpush.msra.mxu0 0.0
    %1069 = vmatpush.msra.mxu0 0.0
    %1070 = vmatpush.msra.mxu0 0.0
    %1071 = vmatpush.msra.mxu0 0.0
    %1072 = vmatpush.msra.mxu0 0.0
    %1073 = vmatpush.msra.mxu0 0.0
    %1074 = vmatpush.msra.mxu0 0.0
    %1075 = vmatpush.msra.mxu0 0.0
    %1076 = vmatpush.msra.mxu0 0.0
    %1077 = vmatpush.msra.mxu0 0.0
    %v1078 = vand.u32 %v762, 4294901760
    %1079 = vmatpush.msra.mxu0 %v1078
    %v1080 = vand.u32 %v761, 4294901760
    %1081 = vmatpush.msra.mxu0 %v1080
    %v1082 = vand.u32 %v760, 4294901760
    %1083 = vmatpush.msra.mxu0 %v1082
    %v1084 = vand.u32 %v759, 4294901760
    %1085 = vmatpush.msra.mxu0 %v1084
    %v1086 = vand.u32 %v758, 4294901760
    %1087 = vmatpush.msra.mxu0 %v1086
    %v1088 = vand.u32 %v957, 4294901760
    %v1089 = vsub.f32 %v957, %v1088
    %v1090 = vand.u32 %v1089, 4294901760
    %1091 = vmatmul.f32.gmra.mxu0 %v1090
    %v1092 = vpop.f32.mrf.mxu0
    %v1093 = vadd.f32 %v1065, %v1092
    %1094 = vdwg.mxu0
    %1095 = vmatpush.msra.mxu0 0.0
    %1096 = vmatpush.msra.mxu0 0.0
    %1097 = vmatpush.msra.mxu0 0.0
    %1098 = vmatpush.msra.mxu0 0.0
    %1099 = vmatpush.msra.mxu0 0.0
    %1100 = vmatpush.msra.mxu0 0.0
    %1101 = vmatpush.msra.mxu0 0.0
    %1102 = vmatpush.msra.mxu0 0.0
    %1103 = vmatpush.msra.mxu0 0.0
    %1104 = vmatpush.msra.mxu0 0.0
    %1105 = vmatpush.msra.mxu0 0.0
    %v1106 = vand.u32 %v762, 4294901760
    %v1107 = vsub.f32 %v762, %v1106
    %v1108 = vand.u32 %v1107, 4294901760
    %1109 = vmatpush.msra.mxu0 %v1108
    %v1110 = vand.u32 %v761, 4294901760
    %v1111 = vsub.f32 %v761, %v1110
    %v1112 = vand.u32 %v1111, 4294901760
    %1113 = vmatpush.msra.mxu0 %v1112
    %v1114 = vand.u32 %v760, 4294901760
    %v1115 = vsub.f32 %v760, %v1114
    %v1116 = vand.u32 %v1115, 4294901760
    %1117 = vmatpush.msra.mxu0 %v1116
    %v1118 = vand.u32 %v759, 4294901760
    %v1119 = vsub.f32 %v759, %v1118
    %v1120 = vand.u32 %v1119, 4294901760
    %1121 = vmatpush.msra.mxu0 %v1120
    %v1122 = vand.u32 %v758, 4294901760
    %v1123 = vsub.f32 %v758, %v1122
    %v1124 = vand.u32 %v1123, 4294901760
    %1125 = vmatpush.msra.mxu0 %v1124
    %v1126 = vand.u32 %v957, 4294901760
    %1127 = vmatmul.f32.gmra.mxu0 %v1126
    %v1128 = vpop.f32.mrf.mxu0
    %v1129 = vadd.f32 %v1093, %v1128
    %1130 = vdwg.mxu0
    %1131 = vmatpush.msra.mxu0 0.0
    %1132 = vmatpush.msra.mxu0 0.0
    %1133 = vmatpush.msra.mxu0 0.0
    %1134 = vmatpush.msra.mxu0 0.0
    %1135 = vmatpush.msra.mxu0 0.0
    %1136 = vmatpush.msra.mxu0 0.0
    %1137 = vmatpush.msra.mxu0 0.0
    %1138 = vmatpush.msra.mxu0 0.0
    %1139 = vmatpush.msra.mxu0 0.0
    %1140 = vmatpush.msra.mxu0 0.0
    %1141 = vmatpush.msra.mxu0 0.0
    %v1142 = vand.u32 %v762, 4294901760
    %1143 = vmatpush.msra.mxu0 %v1142
    %v1144 = vand.u32 %v761, 4294901760
    %1145 = vmatpush.msra.mxu0 %v1144
    %v1146 = vand.u32 %v760, 4294901760
    %1147 = vmatpush.msra.mxu0 %v1146
    %v1148 = vand.u32 %v759, 4294901760
    %1149 = vmatpush.msra.mxu0 %v1148
    %v1150 = vand.u32 %v758, 4294901760
    %1151 = vmatpush.msra.mxu0 %v1150
    %v1152 = vand.u32 %v957, 4294901760
    %1153 = vmatmul.f32.gmra.mxu0 %v1152
    %v1154 = vpop.f32.mrf.mxu0
    %v1155 = vadd.f32 %v1129, %v1154
    %1156 = vdwg.mxu0
    %v1157 = vld [vmem:[%s12] sm:$0x1]
    %v1158 = vadd.f32 %v1155, %v1157
    %v1159 = vxor.u32 %v1158, 2147483648
    %v1160 = vmul.f32 %v1159, 1.442695
    %v1161 = vpow.pop %v1160
    %v1162 = vadd.f32 %v1161, 1.0
    %v1163 = vrcp.pop %v1162
    %v1164 = vmul.f32 %v1162, %v1163
    %v1165 = vsub.f32 1.0, %v1164
    %v1166 = vmul.f32 %v1163, %v1165
    %v1167 = vadd.f32 %v1163, %v1166
    %vm1168 = vweird.f32 %v1162
    %vm1169 = vweird.f32 %v1163
    %vm1170 = vmor %vm1168, %vm1169
    %v1171 = vsel %vm1170, %v1163, %v1167
    %v1172 = vand.u32 2147483647, %v1162
    %vm1173 = vcmp.eq.f32.partialorder %v1172, 8.507059e+37
    %v1174 = vand.u32 %v1162, 2147483648
    %v1175 = vor.u32 1.1754944e-38, %v1174
    %v1176 = vsel %vm1173, %v1175, %v1171
    %v1177 = vmul.f32 1.0, %v1176
    %v1178 = vtanh.pop %v1158
    %v1180 = vperm.slane %v124, 0
    %1181 = vrot.lane.b32.xlu0 %v1180, 32
    %v1182 = vpop.permute.xlu0 %1181
    %v1184 = vmul.f32 %v1177, %v1182
    %1186 = vrot.lane.b32.xlu0 %v1178, 64
    %v1187 = vpop.permute.xlu0 %1186
    %v1189 = vmul.f32 %v1177, %v1187
    %1191 = vrot.lane.b32.xlu0 %v1189, 32
    %v1192 = vpop.permute.xlu0 %1191
    %v1194 = vadd.f32 %v1184, %v1192
    %v1195 = vtanh.pop %v1194
    %1197 = vrot.lane.b32.xlu0 %v1195, 64
    %v1198 = vpop.permute.xlu0 %1197
    %v1200 = vmul.f32 %v1177, %v1198
    %v1201 = vld [vmem:[%s13] sm:$0xff]
    %v1202 = vld [vmem:[%s13 + $0x8] sm:$0xff]
    %v1203 = vld [vmem:[%s13 + $0x10] sm:$0xff]
    %v1204 = vld [vmem:[%s13 + $0x18] sm:$0xff]
    %v1205 = vld [vmem:[%s14] sm:$0x1]
    %1207 = vrot.lane.b32.xlu0 %v1200, 32
    %v1208 = vpop.permute.xlu0 %1207
    %v1209 = vsel %vm767, %v1208, 0
    %1211 = vmatpush.msra.mxu0 0.0
    %1212 = vmatpush.msra.mxu0 0.0
    %1213 = vmatpush.msra.mxu0 0.0
    %1214 = vmatpush.msra.mxu0 0.0
    %1215 = vmatpush.msra.mxu0 0.0
    %1216 = vmatpush.msra.mxu0 0.0
    %1217 = vmatpush.msra.mxu0 0.0
    %1218 = vmatpush.msra.mxu0 0.0
    %1219 = vmatpush.msra.mxu0 0.0
    %1220 = vmatpush.msra.mxu0 0.0
    %1221 = vmatpush.msra.mxu0 0.0
    %1222 = vmatpush.msra.mxu0 0.0
    %v1223 = vand.u32 %v1204, 4294901760
    %1224 = vmatpush.msra.mxu0 %v1223
    %v1225 = vand.u32 %v1203, 4294901760
    %1226 = vmatpush.msra.mxu0 %v1225
    %v1227 = vand.u32 %v1202, 4294901760
    %1228 = vmatpush.msra.mxu0 %v1227
    %v1229 = vand.u32 %v1201, 4294901760
    %1230 = vmatpush.msra.mxu0 %v1229
    %v1231 = vand.u32 %v1209, 4294901760
    %v1232 = vsub.f32 %v1209, %v1231
    %v1233 = vand.u32 %v1232, 4294901760
    %v1234 = vsub.f32 %v1232, %v1233
    %v1235 = vand.u32 %v1234, 4294901760
    %1236 = vmatmul.f32.gmra.mxu0 %v1235
    %v1237 = vpop.f32.mrf.mxu0
    %v1238 = vadd.f32 %v1205, %v1237
    %1239 = vdwg.mxu0
    %1240 = vmatpush.msra.mxu0 0.0
    %1241 = vmatpush.msra.mxu0 0.0
    %1242 = vmatpush.msra.mxu0 0.0
    %1243 = vmatpush.msra.mxu0 0.0
    %1244 = vmatpush.msra.mxu0 0.0
    %1245 = vmatpush.msra.mxu0 0.0
    %1246 = vmatpush.msra.mxu0 0.0
    %1247 = vmatpush.msra.mxu0 0.0
    %1248 = vmatpush.msra.mxu0 0.0
    %1249 = vmatpush.msra.mxu0 0.0
    %1250 = vmatpush.msra.mxu0 0.0
    %1251 = vmatpush.msra.mxu0 0.0
    %v1252 = vand.u32 %v1204, 4294901760
    %v1253 = vsub.f32 %v1204, %v1252
    %v1254 = vand.u32 %v1253, 4294901760
    %v1255 = vsub.f32 %v1253, %v1254
    %v1256 = vand.u32 %v1255, 4294901760
    %1257 = vmatpush.msra.mxu0 %v1256
    %v1258 = vand.u32 %v1203, 4294901760
    %v1259 = vsub.f32 %v1203, %v1258
    %v1260 = vand.u32 %v1259, 4294901760
    %v1261 = vsub.f32 %v1259, %v1260
    %v1262 = vand.u32 %v1261, 4294901760
    %1263 = vmatpush.msra.mxu0 %v1262
    %v1264 = vand.u32 %v1202, 4294901760
    %v1265 = vsub.f32 %v1202, %v1264
    %v1266 = vand.u32 %v1265, 4294901760
    %v1267 = vsub.f32 %v1265, %v1266
    %v1268 = vand.u32 %v1267, 4294901760
    %1269 = vmatpush.msra.mxu0 %v1268
    %v1270 = vand.u32 %v1201, 4294901760
    %v1271 = vsub.f32 %v1201, %v1270
    %v1272 = vand.u32 %v1271, 4294901760
    %v1273 = vsub.f32 %v1271, %v1272
    %v1274 = vand.u32 %v1273, 4294901760
    %1275 = vmatpush.msra.mxu0 %v1274
    %v1276 = vand.u32 %v1209, 4294901760
    %1277 = vmatmul.f32.gmra.mxu0 %v1276
    %v1278 = vpop.f32.mrf.mxu0
    %v1279 = vadd.f32 %v1238, %v1278
    %1280 = vdwg.mxu0
    %1281 = vmatpush.msra.mxu0 0.0
    %1282 = vmatpush.msra.mxu0 0.0
    %1283 = vmatpush.msra.mxu0 0.0
    %1284 = vmatpush.msra.mxu0 0.0
    %1285 = vmatpush.msra.mxu0 0.0
    %1286 = vmatpush.msra.mxu0 0.0
    %1287 = vmatpush.msra.mxu0 0.0
    %1288 = vmatpush.msra.mxu0 0.0
    %1289 = vmatpush.msra.mxu0 0.0
    %1290 = vmatpush.msra.mxu0 0.0
    %1291 = vmatpush.msra.mxu0 0.0
    %1292 = vmatpush.msra.mxu0 0.0
    %v1293 = vand.u32 %v1204, 4294901760
    %v1294 = vsub.f32 %v1204, %v1293
    %1295 = vmatpush.msra.mxu0 %v1294
    %v1296 = vand.u32 %v1203, 4294901760
    %v1297 = vsub.f32 %v1203, %v1296
    %1298 = vmatpush.msra.mxu0 %v1297
    %v1299 = vand.u32 %v1202, 4294901760
    %v1300 = vsub.f32 %v1202, %v1299
    %1301 = vmatpush.msra.mxu0 %v1300
    %v1302 = vand.u32 %v1201, 4294901760
    %v1303 = vsub.f32 %v1201, %v1302
    %1304 = vmatpush.msra.mxu0 %v1303
    %v1305 = vand.u32 %v1209, 4294901760
    %v1306 = vsub.f32 %v1209, %v1305
    %1307 = vmatmul.f32.gmra.mxu0 %v1306
    %v1308 = vpop.f32.mrf.mxu0
    %v1309 = vadd.f32 %v1279, %v1308
    %1310 = vdwg.mxu0
    %1311 = vmatpush.msra.mxu0 0.0
    %1312 = vmatpush.msra.mxu0 0.0
    %1313 = vmatpush.msra.mxu0 0.0
    %1314 = vmatpush.msra.mxu0 0.0
    %1315 = vmatpush.msra.mxu0 0.0
    %1316 = vmatpush.msra.mxu0 0.0
    %1317 = vmatpush.msra.mxu0 0.0
    %1318 = vmatpush.msra.mxu0 0.0
    %1319 = vmatpush.msra.mxu0 0.0
    %1320 = vmatpush.msra.mxu0 0.0
    %1321 = vmatpush.msra.mxu0 0.0
    %1322 = vmatpush.msra.mxu0 0.0
    %v1323 = vand.u32 %v1204, 4294901760
    %1324 = vmatpush.msra.mxu0 %v1323
    %v1325 = vand.u32 %v1203, 4294901760
    %1326 = vmatpush.msra.mxu0 %v1325
    %v1327 = vand.u32 %v1202, 4294901760
    %1328 = vmatpush.msra.mxu0 %v1327
    %v1329 = vand.u32 %v1201, 4294901760
    %1330 = vmatpush.msra.mxu0 %v1329
    %v1331 = vand.u32 %v1209, 4294901760
    %v1332 = vsub.f32 %v1209, %v1331
    %v1333 = vand.u32 %v1332, 4294901760
    %1334 = vmatmul.f32.gmra.mxu0 %v1333
    %v1335 = vpop.f32.mrf.mxu0
    %v1336 = vadd.f32 %v1309, %v1335
    %1337 = vdwg.mxu0
    %1338 = vmatpush.msra.mxu0 0.0
    %1339 = vmatpush.msra.mxu0 0.0
    %1340 = vmatpush.msra.mxu0 0.0
    %1341 = vmatpush.msra.mxu0 0.0
    %1342 = vmatpush.msra.mxu0 0.0
    %1343 = vmatpush.msra.mxu0 0.0
    %1344 = vmatpush.msra.mxu0 0.0
    %1345 = vmatpush.msra.mxu0 0.0
    %1346 = vmatpush.msra.mxu0 0.0
    %1347 = vmatpush.msra.mxu0 0.0
    %1348 = vmatpush.msra.mxu0 0.0
    %1349 = vmatpush.msra.mxu0 0.0
    %v1350 = vand.u32 %v1204, 4294901760
    %v1351 = vsub.f32 %v1204, %v1350
    %v1352 = vand.u32 %v1351, 4294901760
    %1353 = vmatpush.msra.mxu0 %v1352
    %v1354 = vand.u32 %v1203, 4294901760
    %v1355 = vsub.f32 %v1203, %v1354
    %v1356 = vand.u32 %v1355, 4294901760
    %1357 = vmatpush.msra.mxu0 %v1356
    %v1358 = vand.u32 %v1202, 4294901760
    %v1359 = vsub.f32 %v1202, %v1358
    %v1360 = vand.u32 %v1359, 4294901760
    %1361 = vmatpush.msra.mxu0 %v1360
    %v1362 = vand.u32 %v1201, 4294901760
    %v1363 = vsub.f32 %v1201, %v1362
    %v1364 = vand.u32 %v1363, 4294901760
    %1365 = vmatpush.msra.mxu0 %v1364
    %v1366 = vand.u32 %v1209, 4294901760
    %1367 = vmatmul.f32.gmra.mxu0 %v1366
    %v1368 = vpop.f32.mrf.mxu0
    %v1369 = vadd.f32 %v1336, %v1368
    %1370 = vdwg.mxu0
    %1371 = vmatpush.msra.mxu0 0.0
    %1372 = vmatpush.msra.mxu0 0.0
    %1373 = vmatpush.msra.mxu0 0.0
    %1374 = vmatpush.msra.mxu0 0.0
    %1375 = vmatpush.msra.mxu0 0.0
    %1376 = vmatpush.msra.mxu0 0.0
    %1377 = vmatpush.msra.mxu0 0.0
    %1378 = vmatpush.msra.mxu0 0.0
    %1379 = vmatpush.msra.mxu0 0.0
    %1380 = vmatpush.msra.mxu0 0.0
    %1381 = vmatpush.msra.mxu0 0.0
    %1382 = vmatpush.msra.mxu0 0.0
    %v1383 = vand.u32 %v1204, 4294901760
    %1384 = vmatpush.msra.mxu0 %v1383
    %v1385 = vand.u32 %v1203, 4294901760
    %1386 = vmatpush.msra.mxu0 %v1385
    %v1387 = vand.u32 %v1202, 4294901760
    %1388 = vmatpush.msra.mxu0 %v1387
    %v1389 = vand.u32 %v1201, 4294901760
    %1390 = vmatpush.msra.mxu0 %v1389
    %v1391 = vand.u32 %v1209, 4294901760
    %1392 = vmatmul.f32.gmra.mxu0 %v1391
    %v1393 = vpop.f32.mrf.mxu0
    %v1394 = vadd.f32 %v1369, %v1393
    %1395 = vdwg.mxu0
    %vm1396 = vcmask 24576
    %1397 = vst.msk [vmem:[#allocation11] sm:$0x1] %vm1396, %v1394
    %vm1398 = vcmask 319488
    %1399 = vst.msk [vmem:[#allocation12] sm:$0x1] %vm1398, %v757
    %vm1401 = vcmask 253952
    %1402 = vst.msk [vmem:[#allocation14] sm:$0x1] %vm1401, %v1208
    %1404 = vrot.lane.b32.xlu0 %v1194, 96
    %v1405 = vpop.permute.xlu0 %1404
    %1407 = vst.msk [vmem:[#allocation15] sm:$0x1] %vm1401, %v1405
    // Predicated region
    $region78: #{tpu_custom_call.1} parent=1 // pred_check
      _
    $region79: #{tpu_custom_call.1} parent=1 // pred_check_branch
      %1409 = sbr.rel (0) target = $region81
    $region80: #{tpu_custom_call.1} parent=1 // pred_region
      %1411 = vsyncadd [#allocation5], 0
      %s1413 = sshll.u32 [#allocation11], 4
      %s1414 = int_to_ptr.vmem [resolvable:$true] %s1413
      %s1415 = sshll.u32 %s15, 4
      %s1416 = int_to_ptr.hbm [resolvable:$true] %s1415
      %1418 = dma.vmem_to_hbm [thread:$0]  %s1414, 16, %s1416, [#allocation5]
    $region81: #{tpu_custom_call.1} parent=1 // pred_fallthru
      _
    // Predicated region
    $region82: #{tpu_custom_call.1} parent=1 // pred_check
      _
    $region83: #{tpu_custom_call.1} parent=1 // pred_check_branch
      %1420 = sbr.rel (0) target = $region85
    $region84: #{tpu_custom_call.1} parent=1 // pred_region
      %1422 = vsyncadd [#allocation13], 0
      %s1424 = sshll.u32 [#allocation12], 4
      %s1425 = int_to_ptr.vmem [resolvable:$true] %s1424
      %s1426 = sshll.u32 %s16, 4
      %s1427 = int_to_ptr.hbm [resolvable:$true] %s1426
      %1429 = dma.vmem_to_hbm [thread:$0]  %s1425, 16, %s1427, [#allocation13]
    $region85: #{tpu_custom_call.1} parent=1 // pred_fallthru
      _
    // Predicated region
    $region86: #{tpu_custom_call.1} parent=1 // pred_check
      _
    $region87: #{tpu_custom_call.1} parent=1 // pred_check_branch
      %1431 = sbr.rel (0) target = $region89
    $region88: #{tpu_custom_call.1} parent=1 // pred_region
      %1433 = vsyncadd [#allocation13], 0
      %s1435 = sshll.u32 [#allocation14], 4
      %s1436 = int_to_ptr.vmem [resolvable:$true] %s1435
      %s1437 = sshll.u32 %s17, 4
      %s1438 = int_to_ptr.hbm [resolvable:$true] %s1437
      %1440 = dma.vmem_to_hbm [thread:$0]  %s1436, 16, %s1438, [#allocation13]
    $region89: #{tpu_custom_call.1} parent=1 // pred_fallthru
      _
    // Predicated region
    $region90: #{tpu_custom_call.1} parent=1 // pred_check
      _
    $region91: #{tpu_custom_call.1} parent=1 // pred_check_branch
      %1442 = sbr.rel (0) target = $region93
    $region92: #{tpu_custom_call.1} parent=1 // pred_region
      %1444 = vsyncadd [#allocation16], 0
      %s1446 = sshll.u32 [#allocation15], 4
      %s1447 = int_to_ptr.vmem [resolvable:$true] %s1446
      %s1448 = sshll.u32 %s18, 4
      %s1449 = int_to_ptr.hbm [resolvable:$true] %s1448
      %1451 = dma.vmem_to_hbm [thread:$0]  %s1447, 16, %s1449, [#allocation16]
    $region93: #{tpu_custom_call.1} parent=1 // pred_fallthru
      _
    // Predicated region
    $region94: #{tpu_custom_call.1} parent=1 // pred_check
      _
    $region95: #{tpu_custom_call.1} parent=1 // pred_check_branch
      %1453 = sbr.rel (0) target = $region97
    $region96: #{tpu_custom_call.1} parent=1 // pred_region
      %1455 = dma.done [#allocation5], 16
    $region97: #{tpu_custom_call.1} parent=1 // pred_fallthru
      _
    // Predicated region
    $region98: #{tpu_custom_call.1} parent=1 // pred_check
      _
    $region99: #{tpu_custom_call.1} parent=1 // pred_check_branch
      %1457 = sbr.rel (0) target = $region101
    $region100: #{tpu_custom_call.1} parent=1 // pred_region
      %1459 = dma.done [#allocation13], 16
    $region101: #{tpu_custom_call.1} parent=1 // pred_fallthru
      _
    // Predicated region
    $region102: #{tpu_custom_call.1} parent=1 // pred_check
      _
    $region103: #{tpu_custom_call.1} parent=1 // pred_check_branch
      %1461 = sbr.rel (0) target = $region105
    $region104: #{tpu_custom_call.1} parent=1 // pred_region
      %1463 = dma.done [#allocation13], 16
    $region105: #{tpu_custom_call.1} parent=1 // pred_fallthru
      _
    // Predicated region
    $region106: #{tpu_custom_call.1} parent=1 // pred_check
      _
    $region107: #{tpu_custom_call.1} parent=1 // pred_check_branch
      %1465 = sbr.rel (0) target = $region109
    $region108: #{tpu_custom_call.1} parent=1 // pred_region
      %1467 = dma.done [#allocation16], 16
    $region109: #{tpu_custom_call.1} parent=1 // pred_fallthru
      _
    %1468 = vsyncpa [#allocation4], 1
    %1469 = vsyncpa [#allocation7], 1
    %1470 = vsyncpa [#allocation10], 1
    %1471 = vsyncpa [#allocation5], 1
    %1472 = vsyncpa [#allocation13], 1
    %1473 = vsyncpa [#allocation16], 1

</llo_original>
